<compile_context>
chip_gen: v6e
topology: v6e:2x2x1
jax: 0.10.0
libtpu: 0.0.40
codegen_flags: <defaults>
</compile_context>

<pallas_src>
import jax
import jax.numpy as jnp
from jax.experimental import pallas as pl
from jax.experimental.pallas import tpu as pltpu


INTERM_DIM = 512


def _leaky_relu(x, slope=0.2):
    return jnp.where(x >= 0, x, slope * x)


def shape_disc_kernel(x_ref, wc_ref, bc_ref, w1_ref, b1_ref, w2_ref, b2_ref,
                      out_ref, acc_ref):
    # x_ref:  (1, C_in, TN)  bf16  NCW chunk of points for one batch element
    # wc_ref: (C_in, 512)    bf16  conv weight stored as (in, out)
    # bc_ref: (1, 512) f32, w1_ref: (512, 64), b1_ref: (1, 64),
    # w2_ref: (64, S), b2_ref: (1, S)
    # out_ref: (1, 1, S)
    # acc_ref: (1, 512) f32  running max over the point axis (VMEM scratch)
    k = pl.program_id(1)

    @pl.when(k == 0)
    def _():
        acc_ref[...] = jnp.full_like(acc_ref, -jnp.inf)

    # Conv1d(kernel_size=1) == matmul over channels.  Contract the channel
    # (sublane) axis of the NCW chunk directly so no HBM transpose is needed.
    h = jax.lax.dot_general(
        x_ref[0], wc_ref[...],
        dimension_numbers=(((0,), (0,)), ((), ())),
        preferred_element_type=jnp.float32,
    )                                                           # (TN, 512) f32

    # Bias + leaky_relu deferred until after the max (equivalent math); only a
    # running max over the point axis is kept per chunk.
    acc_ref[...] = jnp.maximum(acc_ref[...], jnp.max(h, axis=0, keepdims=True))

    @pl.when(k == pl.num_programs(1) - 1)
    def _():
        m = _leaky_relu(acc_ref[...] + bc_ref[...])             # (1, 512)
        y = _leaky_relu(
            jnp.dot(m, w1_ref[...], preferred_element_type=jnp.float32)
            + b1_ref[...])                                      # (1, 64)
        out = (jnp.dot(y, w2_ref[...], preferred_element_type=jnp.float32)
               + b2_ref[...])                                   # (1, S)
        out_ref[...] = out[None].astype(out_ref.dtype)


def _pick_tile(n):
    for tn in (512, 256, 128):
        if n % tn == 0:
            return tn
    return n  # fall back to a single chunk covering all points


def shape_disc_net(x_ncw, params):
    """x_ncw: (B, C_in, N) float32, PyTorch Conv1d (NCW) layout."""
    wc, bc, w1, b1, w2, b2 = params
    B, C_in, N = x_ncw.shape
    num_shapes = w2.shape[1]
    tn = _pick_tile(N)
    n_chunks = N // tn

    # bf16 for the big streaming matmul (accumulation stays f32 on the MXU).
    x_bf = x_ncw.astype(jnp.bfloat16)
    wc_bf = wc.astype(jnp.bfloat16)
    bc2 = bc.reshape(1, INTERM_DIM).astype(jnp.float32)
    b12 = b1.reshape(1, -1).astype(jnp.float32)
    b22 = b2.reshape(1, -1).astype(jnp.float32)

    def resident(shape):
        return pl.BlockSpec(shape, lambda b, k: (0,) * len(shape))

    out = pl.pallas_call(
        shape_disc_kernel,
        out_shape=jax.ShapeDtypeStruct((B, 1, num_shapes), jnp.float32),
        grid_spec=pltpu.PrefetchScalarGridSpec(
            num_scalar_prefetch=0,
            grid=(B, n_chunks),                   # (batch, point-chunk)
            in_specs=[
                pl.BlockSpec((1, C_in, tn), lambda b, k: (b, 0, k)),
                resident(wc_bf.shape),
                resident(bc2.shape),
                resident(w1.shape),
                resident(b12.shape),
                resident(w2.shape),
                resident(b22.shape),
            ],
            out_specs=pl.BlockSpec((1, 1, num_shapes), lambda b, k: (b, 0, 0)),
            scratch_shapes=[pltpu.VMEM((1, INTERM_DIM), jnp.float32)],
        ),
        compiler_params=pltpu.CompilerParams(
            dimension_semantics=("parallel", "arbitrary")),
    )(x_bf, wc_bf, bc2, w1, b12, w2, b22)
    return out.reshape(B, num_shapes)


def init_params(key, shared_output_dim, num_shapes):
    """Deterministic init mimicking PyTorch's default uniform(-1/sqrt(fan_in), ...)."""
    ks = jax.random.split(key, 6)

    def unif(k, shape, fan_in):
        bound = 1.0 / jnp.sqrt(fan_in)
        return jax.random.uniform(k, shape, jnp.float32, -bound, bound)

    # Conv1d weight stored pre-transposed as (C_in, interm_dim)
    wc = unif(ks[0], (shared_output_dim, INTERM_DIM), shared_output_dim)
    bc = unif(ks[1], (INTERM_DIM,), shared_output_dim)
    w1 = unif(ks[2], (INTERM_DIM, 64), INTERM_DIM)
    b1 = unif(ks[3], (64,), INTERM_DIM)
    w2 = unif(ks[4], (64, num_shapes), 64)
    b2 = unif(ks[5], (num_shapes,), 64)
    return (wc, bc, w1, b1, w2, b2)


def reference(x_ncw, params):
    """Pure-JAX reference matching the PyTorch forward.

    Conv inputs are bf16-rounded to mirror the kernel's intentional bf16 cast
    (products are then exact in f32, so the comparison stays tight)."""
    wc, bc, w1, b1, w2, b2 = params
    hp = jax.lax.Precision.HIGHEST
    xb = x_ncw.astype(jnp.bfloat16).astype(jnp.float32)
    wcb = wc.astype(jnp.bfloat16).astype(jnp.float32)
    h = jnp.einsum('bcn,cd->bdn', xb, wcb, precision=hp) + bc[None, :, None]
    h = jnp.where(h >= 0, h, 0.2 * h)
    m = jnp.max(h, axis=2)                       # (B, 512)
    z = jnp.dot(m, w1, precision=hp) + b1
    y = jnp.where(z >= 0, z, 0.2 * z)
    return jnp.dot(y, w2, precision=hp) + b2


if __name__ == "__main__":
    key = jax.random.PRNGKey(0)
    k_x, k_p = jax.random.split(key)

    B, C_in, N = 2, 64, 512      # batch, shared_output_dim, num points (4 chunks of 128)
    num_shapes = 4

    x = jax.random.normal(k_x, (B, C_in, N), jnp.float32)
    params = init_params(k_p, C_in, num_shapes)

    out = jax.block_until_ready(shape_disc_net(x, params))
    ref = reference(x, params)

    assert out.shape == (B, num_shapes)
    assert jnp.allclose(out, ref, atol=2e-3, rtol=2e-3), (
        f"mismatch vs reference: max|diff|={float(jnp.max(jnp.abs(out - ref)))}")

    print("KERNEL_OK")
</pallas_src>

<mosaic_0001>
module attributes {stable_mosaic.version = 11 : i64} {
  func.func @shape_disc_kernel(%arg0: i32, %arg1: i32, %arg2: memref<1x64x512xbf16, #tpu.memory_space<vmem>>, %arg3: memref<64x512xbf16, #tpu.memory_space<vmem>>, %arg4: memref<1x512xf32, #tpu.memory_space<vmem>>, %arg5: memref<512x64xf32, #tpu.memory_space<vmem>>, %arg6: memref<1x64xf32, #tpu.memory_space<vmem>>, %arg7: memref<64x4xf32, #tpu.memory_space<vmem>>, %arg8: memref<1x4xf32, #tpu.memory_space<vmem>>, %arg9: memref<1x1x4xf32, #tpu.memory_space<vmem>>, %arg10: memref<1x512xf32, #tpu.memory_space<vmem>>) attributes {dimension_semantics = [#tpu.dimension_semantics<parallel>, #tpu.dimension_semantics<arbitrary>], iteration_bounds = array<i64: 2, 1>, scalar_prefetch = 0 : i64, scratch_operands = 1 : i64, tpu.core_type = #tpu.core_type<tc>, window_params = [{transform_indices = @transform_0, window_bounds = array<i64: 1, 64, 512>}, {pipeline_mode = #tpu.pipeline_mode<synchronous>, transform_indices = @transform_1, window_bounds = array<i64: 64, 512>}, {pipeline_mode = #tpu.pipeline_mode<synchronous>, transform_indices = @transform_2, window_bounds = array<i64: 1, 512>}, {pipeline_mode = #tpu.pipeline_mode<synchronous>, transform_indices = @transform_3, window_bounds = array<i64: 512, 64>}, {pipeline_mode = #tpu.pipeline_mode<synchronous>, transform_indices = @transform_4, window_bounds = array<i64: 1, 64>}, {pipeline_mode = #tpu.pipeline_mode<synchronous>, transform_indices = @transform_5, window_bounds = array<i64: 64, 4>}, {pipeline_mode = #tpu.pipeline_mode<synchronous>, transform_indices = @transform_6, window_bounds = array<i64: 1, 4>}, {transform_indices = @transform_7, window_bounds = array<i64: 1, 1, 4>}]} {
    %c0_i32 = arith.constant 0 : i32
    %0 = arith.cmpi eq, %arg1, %c0_i32 : i32
    %1 = arith.extui %0 : i1 to i32
    %c0_i32_0 = arith.constant 0 : i32
    %2 = arith.cmpi ne, %1, %c0_i32_0 : i32
    scf.if %2 {
      %cst_12 = arith.constant 0xFF800000 : f32
      %15 = vector.broadcast %cst_12 : f32 to vector<1x512xf32>
      %c0_13 = arith.constant 0 : index
      %c0_14 = arith.constant 0 : index
      %16 = vector.load %arg10[%c0_13, %c0_14] : memref<1x512xf32, #tpu.memory_space<vmem>>, vector<1x512xf32>
      tpu.vector_store %arg10[%c0_13, %c0_14], %15 {strides = array<i32>} : memref<1x512xf32, #tpu.memory_space<vmem>>, vector<1x512xf32>,
    } else {
    }
    %c0 = arith.constant 0 : index
    %c0_1 = arith.constant 0 : index
    %c0_2 = arith.constant 0 : index
    %3 = vector.load %arg2[%c0, %c0_1, %c0_2] : memref<1x64x512xbf16, #tpu.memory_space<vmem>>, vector<1x64x512xbf16>
    %4 = vector.shape_cast %3 : vector<1x64x512xbf16> to vector<64x512xbf16>
    %c0_3 = arith.constant 0 : index
    %c0_4 = arith.constant 0 : index
    %5 = vector.load %arg3[%c0_3, %c0_4] : memref<64x512xbf16, #tpu.memory_space<vmem>>, vector<64x512xbf16>
    %cst = arith.constant dense<0.000000e+00> : vector<512x512xf32>
    %6 = tpu.matmul %4, %5, %cst {dimension_numbers = #tpu.dot_dimension_numbers<[0], [0], [1], [1], [0, 1, 1, 1], [], []>} : vector<64x512xbf16>, vector<64x512xbf16>, vector<512x512xf32> -> vector<512x512xf32>
    %c0_5 = arith.constant 0 : index
    %c0_6 = arith.constant 0 : index
    %7 = vector.load %arg10[%c0_5, %c0_6] : memref<1x512xf32, #tpu.memory_space<vmem>>, vector<1x512xf32>
    %cst_7 = arith.constant dense<0xFF800000> : vector<512xf32>
    %8 = vector.multi_reduction <maximumf>, %6, %cst_7 [0] : vector<512x512xf32> to vector<512xf32>
    %9 = vector.shape_cast %8 : vector<512xf32> to vector<1x512xf32>
    %10 = arith.maximumf %7, %9 : vector<1x512xf32>
    %c0_8 = arith.constant 0 : index
    %c0_9 = arith.constant 0 : index
    %11 = vector.load %arg10[%c0_8, %c0_9] : memref<1x512xf32, #tpu.memory_space<vmem>>, vector<1x512xf32>
    tpu.vector_store %arg10[%c0_8, %c0_9], %10 {strides = array<i32>} : memref<1x512xf32, #tpu.memory_space<vmem>>, vector<1x512xf32>,
    %c0_i32_10 = arith.constant 0 : i32
    %12 = arith.cmpi eq, %arg1, %c0_i32_10 : i32
    %13 = arith.extui %12 : i1 to i32
    %c0_i32_11 = arith.constant 0 : i32
    %14 = arith.cmpi ne, %13, %c0_i32_11 : i32
    scf.if %14 {
      %c0_12 = arith.constant 0 : index
      %c0_13 = arith.constant 0 : index
      %15 = vector.load %arg10[%c0_12, %c0_13] : memref<1x512xf32, #tpu.memory_space<vmem>>, vector<1x512xf32>
      %c0_14 = arith.constant 0 : index
      %c0_15 = arith.constant 0 : index
      %16 = vector.load %arg4[%c0_14, %c0_15] : memref<1x512xf32, #tpu.memory_space<vmem>>, vector<1x512xf32>
      %17 = arith.addf %15, %16 : vector<1x512xf32>
      %cst_16 = arith.constant 0.000000e+00 : f32
      %18 = vector.broadcast %cst_16 : f32 to vector<1x512xf32>
      %19 = arith.cmpf oge, %17, %18 : vector<1x512xf32>
      %cst_17 = arith.constant 2.000000e-01 : f32
      %20 = vector.broadcast %cst_17 : f32 to vector<1x512xf32>
      %21 = arith.mulf %20, %17 : vector<1x512xf32>
      %22 = arith.select %19, %17, %21 : vector<1x512xi1>, vector<1x512xf32>
      %c0_18 = arith.constant 0 : index
      %c0_19 = arith.constant 0 : index
      %23 = vector.load %arg5[%c0_18, %c0_19] : memref<512x64xf32, #tpu.memory_space<vmem>>, vector<512x64xf32>
      %cst_20 = arith.constant dense<0.000000e+00> : vector<1x64xf32>
      %24 = tpu.matmul %22, %23, %cst_20 {dimension_numbers = #tpu.dot_dimension_numbers<[1], [0], [0], [1], [0, 0, 1, 1], [], []>} : vector<1x512xf32>, vector<512x64xf32>, vector<1x64xf32> -> vector<1x64xf32>
      %c0_21 = arith.constant 0 : index
      %c0_22 = arith.constant 0 : index
      %25 = vector.load %arg6[%c0_21, %c0_22] : memref<1x64xf32, #tpu.memory_space<vmem>>, vector<1x64xf32>
      %26 = arith.addf %24, %25 : vector<1x64xf32>
      %cst_23 = arith.constant 0.000000e+00 : f32
      %27 = vector.broadcast %cst_23 : f32 to vector<1x64xf32>
      %28 = arith.cmpf oge, %26, %27 : vector<1x64xf32>
      %cst_24 = arith.constant 2.000000e-01 : f32
      %29 = vector.broadcast %cst_24 : f32 to vector<1x64xf32>
      %30 = arith.mulf %29, %26 : vector<1x64xf32>
      %31 = arith.select %28, %26, %30 : vector<1x64xi1>, vector<1x64xf32>
      %c0_25 = arith.constant 0 : index
      %c0_26 = arith.constant 0 : index
      %32 = vector.load %arg7[%c0_25, %c0_26] : memref<64x4xf32, #tpu.memory_space<vmem>>, vector<64x4xf32>
      %cst_27 = arith.constant dense<0.000000e+00> : vector<1x4xf32>
      %33 = tpu.matmul %31, %32, %cst_27 {dimension_numbers = #tpu.dot_dimension_numbers<[1], [0], [0], [1], [0, 0, 1, 1], [], []>} : vector<1x64xf32>, vector<64x4xf32>, vector<1x4xf32> -> vector<1x4xf32>
      %c0_28 = arith.constant 0 : index
      %c0_29 = arith.constant 0 : index
      %34 = vector.load %arg8[%c0_28, %c0_29] : memref<1x4xf32, #tpu.memory_space<vmem>>, vector<1x4xf32>
      %35 = arith.addf %33, %34 : vector<1x4xf32>
      %36 = vector.shape_cast %35 : vector<1x4xf32> to vector<1x1x4xf32>
      %c0_30 = arith.constant 0 : index
      %c0_31 = arith.constant 0 : index
      %c0_32 = arith.constant 0 : index
      %37 = vector.load %arg9[%c0_30, %c0_31, %c0_32] : memref<1x1x4xf32, #tpu.memory_space<vmem>>, vector<1x1x4xf32>
      tpu.vector_store %arg9[%c0_30, %c0_31, %c0_32], %36 {strides = array<i32>} : memref<1x1x4xf32, #tpu.memory_space<vmem>>, vector<1x1x4xf32>,
    } else {
    }
    return
  }
  func.func @transform_0(%arg0: i32, %arg1: i32) -> (i32, i32, i32) {
    %c0_i32 = arith.constant 0 : i32
    %c0_i32_0 = arith.constant 0 : i32
    return %arg0, %c0_i32, %arg1 : i32, i32, i32
  }
  func.func @transform_1(%arg0: i32, %arg1: i32) -> (i32, i32) {
    %c0_i32 = arith.constant 0 : i32
    %c0_i32_0 = arith.constant 0 : i32
    %c0_i32_1 = arith.constant 0 : i32
    return %c0_i32, %c0_i32_0 : i32, i32
  }
  func.func @transform_2(%arg0: i32, %arg1: i32) -> (i32, i32) {
    %c0_i32 = arith.constant 0 : i32
    %c0_i32_0 = arith.constant 0 : i32
    %c0_i32_1 = arith.constant 0 : i32
    return %c0_i32, %c0_i32_0 : i32, i32
  }
  func.func @transform_3(%arg0: i32, %arg1: i32) -> (i32, i32) {
    %c0_i32 = arith.constant 0 : i32
    %c0_i32_0 = arith.constant 0 : i32
    %c0_i32_1 = arith.constant 0 : i32
    return %c0_i32, %c0_i32_0 : i32, i32
  }
  func.func @transform_4(%arg0: i32, %arg1: i32) -> (i32, i32) {
    %c0_i32 = arith.constant 0 : i32
    %c0_i32_0 = arith.constant 0 : i32
    %c0_i32_1 = arith.constant 0 : i32
    return %c0_i32, %c0_i32_0 : i32, i32
  }
  func.func @transform_5(%arg0: i32, %arg1: i32) -> (i32, i32) {
    %c0_i32 = arith.constant 0 : i32
    %c0_i32_0 = arith.constant 0 : i32
    %c0_i32_1 = arith.constant 0 : i32
    return %c0_i32, %c0_i32_0 : i32, i32
  }
  func.func @transform_6(%arg0: i32, %arg1: i32) -> (i32, i32) {
    %c0_i32 = arith.constant 0 : i32
    %c0_i32_0 = arith.constant 0 : i32
    %c0_i32_1 = arith.constant 0 : i32
    return %c0_i32, %c0_i32_0 : i32, i32
  }
  func.func @transform_7(%arg0: i32, %arg1: i32) -> (i32, i32, i32) {
    %c0_i32 = arith.constant 0 : i32
    %c0_i32_0 = arith.constant 0 : i32
    %c0_i32_1 = arith.constant 0 : i32
    return %arg0, %c0_i32, %c0_i32_0 : i32, i32, i32
  }
}

</mosaic_0001>

<llo_original>
// kernel: tpu_custom_call.1
$region0: #{tpu_custom_call.1}
  #allocation0 [shape = 'u32[]', space=smem, size = 0x4, offset = 0x4, fixed_abs, tag = 'smem constant byte address 0x4 - core index']
  #allocation1 [shape = 'u32[144,128]{1,0:T(1,128)}', space=vmem, size = 0x12000, scoped, tag = 'internal scratch']
  #allocation2 [shape = 'f32[1,512]{1,0:T(1,128)}', space=vmem, size = 0x800, scoped, tag = 'scratch operand']
  %s0 = inlined_call_operand.vmem [shape: bf16[2,64,512], index: 0, kind: input, shape index: {}]
  %s1 = inlined_call_operand.vmem [shape: bf16[64,512], index: 1, kind: input, shape index: {}]
  %s2 = inlined_call_operand.vmem [shape: f32[1,512], index: 2, kind: input, shape index: {}]
  %s3 = inlined_call_operand.vmem [shape: f32[512,64], index: 3, kind: input, shape index: {}]
  %s4 = inlined_call_operand.vmem [shape: f32[1,64], index: 4, kind: input, shape index: {}]
  %s5 = inlined_call_operand.vmem [shape: f32[64,4], index: 5, kind: input, shape index: {}]
  %s6 = inlined_call_operand.vmem [shape: f32[1,4], index: 6, kind: input, shape index: {}]
  %s7 = inlined_call_operand.hbm [shape: f32[2,1,4], index: 7, kind: output, shape index: {}]
  %s8 = sld [smem:[#allocation0]]
  $region69: #{tpu_custom_call.1} parent=0
    _
  %s10 = ssub.s32 1, %s8
  %s11 = scalar_select 0, %s10, %s8
  $region1: #{tpu_custom_call.1} parent=0
    #allocation3 [shape = 'u8[1024]{0}', space=vmem, size = 0x400, scoped, tag = 'output window, operand 0']
    #allocation4 [shape = 's32[2]{0}', space=sflag, size = 0x8, scoped, tag = 'scoped memory for tpu_custom_call.1']
    %12 = vsyncpa [#allocation4], 0
    %s13 = scalar_lea.sflag [#allocation4], 1
    %14 = vsyncpa %s13, 0
    loop: start=0, step=1, limit=4
    $region2: #{tpu_custom_call.1} parent=1 // loop_pre_header
      _
    $region3: #{tpu_custom_call.1} parent=1 // loop_header
      %s16 = sphi 0, %s20
      %p17 = scmp.ge.s32.totalorder %s16, 4
      %s23 = sphi 0, %s35
      %s24 = sphi 0, %s31
      %s25 = sphi 0, %s23
      %s26 = sphi 0, %s24
      %s27 = sphi 0, %s25
      %s28 = sphi 0, %s26
      %s40 = sphi 0, %s42
      %s43 = sphi 0, %s40
      %s44 = sphi 0, %s43
      %s60 = sphi 0, %s44
      %s64 = sphi 0, %s64
      %s66 = sphi 0, %s64
      %s67 = sphi 0, %s66
      %s81 = sphi 0, %s67
      %s85 = sphi 0, %s85
      %s87 = sphi 0, %s85
      %s88 = sphi 0, %s87
      %s102 = sphi 0, %s88
      %s106 = sphi 0, %s106
      %s108 = sphi 0, %s106
      %s109 = sphi 0, %s108
      %s123 = sphi 0, %s109
      %s127 = sphi 0, %s127
      %s129 = sphi 0, %s127
      %s130 = sphi 0, %s129
      %s144 = sphi 0, %s130
      %s148 = sphi 0, %s148
      %s150 = sphi 0, %s148
      %s151 = sphi 0, %s150
      %s165 = sphi 0, %s151
      %s169 = sphi 0, %s169
      %s171 = sphi 0, %s169
      %s172 = sphi 0, %s171
      %s186 = sphi 0, %s172
      %s192 = sphi 0, %s194
      %s195 = sphi 0, %s192
      %s196 = sphi 0, %s195
      %s212 = sphi 0, %s196
    $region4: #{tpu_custom_call.1} parent=1 // loop_header_branch
      %19 = sbr.rel (%p17) target = $region8
    $region5: #{tpu_custom_call.1} parent=1 // loop_body
      %s21 = ssub.s32 %s16, 1
      %s22 = ssub.s32 %s16, 2
      %s29 = sadd.s32 1, %s24
      %p30 = scmp.ge.s32.totalorder %s29, 1
      %s31 = scalar_select %p30, 0, %s29
      %s32 = sadd.s32 1, %s23
      %s33 = scalar_select %p30, %s32, %s23
      %p34 = scmp.ge.s32.totalorder %s33, 2
      %s35 = scalar_select %p34, 0, %s33
      %s36 = ssub.s32 %s23, %s35
      %s37 = ssub.s32 %s24, %s31
      %s38 = sor.u32 %s36, %s37
      %p39 = scmp.eq.s32.totalorder %s38, 0
      %s41 = sadd.s32 %s40, 1
      %s42 = scalar_select %p39, %s40, %s41
      %p45 = pneg %p39
      %p46 = scmp.eq.s32.totalorder %s16, 1
      %p47 = por %p45, %p46
      %p48 = scmp.ne.s32.totalorder %s40, %s43
      %p49 = scmp.eq.s32.totalorder %s16, 0
      %p50 = por %p48, %p49
      %p51 = scmp.ne.s32.totalorder %s40, %s43
      %p52 = scmp.eq.s32.totalorder %s21, 1
      %p53 = por %p51, %p52
      %p54 = scmp.ne.s32.totalorder %s43, %s44
      %p55 = scmp.eq.s32.totalorder %s21, 0
      %p56 = por %p54, %p55
      %p57 = scmp.ne.s32.totalorder %s43, %s44
      %p58 = scmp.eq.s32.totalorder %s22, 1
      %p59 = por %p57, %p58
      %p61 = scmp.ne.s32.totalorder %s44, %s60
      %p62 = scmp.eq.s32.totalorder %s22, 0
      %p63 = por %p61, %p62
      %s65 = sadd.s32 %s64, 1
      %p68 = scmp.eq.s32.totalorder %s16, 1
      %p69 = scmp.ne.s32.totalorder %s64, %s66
      %p70 = scmp.eq.s32.totalorder %s16, 0
      %p71 = por %p69, %p70
      %p72 = scmp.ne.s32.totalorder %s64, %s66
      %p73 = scmp.eq.s32.totalorder %s21, 1
      %p74 = por %p72, %p73
      %p75 = scmp.ne.s32.totalorder %s66, %s67
      %p76 = scmp.eq.s32.totalorder %s21, 0
      %p77 = por %p75, %p76
      %p78 = scmp.ne.s32.totalorder %s66, %s67
      %p79 = scmp.eq.s32.totalorder %s22, 1
      %p80 = por %p78, %p79
      %p82 = scmp.ne.s32.totalorder %s67, %s81
      %p83 = scmp.eq.s32.totalorder %s22, 0
      %p84 = por %p82, %p83
      %s86 = sadd.s32 %s85, 1
      %p89 = scmp.eq.s32.totalorder %s16, 1
      %p90 = scmp.ne.s32.totalorder %s85, %s87
      %p91 = scmp.eq.s32.totalorder %s16, 0
      %p92 = por %p90, %p91
      %p93 = scmp.ne.s32.totalorder %s85, %s87
      %p94 = scmp.eq.s32.totalorder %s21, 1
      %p95 = por %p93, %p94
      %p96 = scmp.ne.s32.totalorder %s87, %s88
      %p97 = scmp.eq.s32.totalorder %s21, 0
      %p98 = por %p96, %p97
      %p99 = scmp.ne.s32.totalorder %s87, %s88
      %p100 = scmp.eq.s32.totalorder %s22, 1
      %p101 = por %p99, %p100
      %p103 = scmp.ne.s32.totalorder %s88, %s102
      %p104 = scmp.eq.s32.totalorder %s22, 0
      %p105 = por %p103, %p104
      %s107 = sadd.s32 %s106, 1
      %p110 = scmp.eq.s32.totalorder %s16, 1
      %p111 = scmp.ne.s32.totalorder %s106, %s108
      %p112 = scmp.eq.s32.totalorder %s16, 0
      %p113 = por %p111, %p112
      %p114 = scmp.ne.s32.totalorder %s106, %s108
      %p115 = scmp.eq.s32.totalorder %s21, 1
      %p116 = por %p114, %p115
      %p117 = scmp.ne.s32.totalorder %s108, %s109
      %p118 = scmp.eq.s32.totalorder %s21, 0
      %p119 = por %p117, %p118
      %p120 = scmp.ne.s32.totalorder %s108, %s109
      %p121 = scmp.eq.s32.totalorder %s22, 1
      %p122 = por %p120, %p121
      %p124 = scmp.ne.s32.totalorder %s109, %s123
      %p125 = scmp.eq.s32.totalorder %s22, 0
      %p126 = por %p124, %p125
      %s128 = sadd.s32 %s127, 1
      %p131 = scmp.eq.s32.totalorder %s16, 1
      %p132 = scmp.ne.s32.totalorder %s127, %s129
      %p133 = scmp.eq.s32.totalorder %s16, 0
      %p134 = por %p132, %p133
      %p135 = scmp.ne.s32.totalorder %s127, %s129
      %p136 = scmp.eq.s32.totalorder %s21, 1
      %p137 = por %p135, %p136
      %p138 = scmp.ne.s32.totalorder %s129, %s130
      %p139 = scmp.eq.s32.totalorder %s21, 0
      %p140 = por %p138, %p139
      %p141 = scmp.ne.s32.totalorder %s129, %s130
      %p142 = scmp.eq.s32.totalorder %s22, 1
      %p143 = por %p141, %p142
      %p145 = scmp.ne.s32.totalorder %s130, %s144
      %p146 = scmp.eq.s32.totalorder %s22, 0
      %p147 = por %p145, %p146
      %s149 = sadd.s32 %s148, 1
      %p152 = scmp.eq.s32.totalorder %s16, 1
      %p153 = scmp.ne.s32.totalorder %s148, %s150
      %p154 = scmp.eq.s32.totalorder %s16, 0
      %p155 = por %p153, %p154
      %p156 = scmp.ne.s32.totalorder %s148, %s150
      %p157 = scmp.eq.s32.totalorder %s21, 1
      %p158 = por %p156, %p157
      %p159 = scmp.ne.s32.totalorder %s150, %s151
      %p160 = scmp.eq.s32.totalorder %s21, 0
      %p161 = por %p159, %p160
      %p162 = scmp.ne.s32.totalorder %s150, %s151
      %p163 = scmp.eq.s32.totalorder %s22, 1
      %p164 = por %p162, %p163
      %p166 = scmp.ne.s32.totalorder %s151, %s165
      %p167 = scmp.eq.s32.totalorder %s22, 0
      %p168 = por %p166, %p167
      %s170 = sadd.s32 %s169, 1
      %p173 = scmp.eq.s32.totalorder %s16, 1
      %p174 = scmp.ne.s32.totalorder %s169, %s171
      %p175 = scmp.eq.s32.totalorder %s16, 0
      %p176 = por %p174, %p175
      %p177 = scmp.ne.s32.totalorder %s169, %s171
      %p178 = scmp.eq.s32.totalorder %s21, 1
      %p179 = por %p177, %p178
      %p180 = scmp.ne.s32.totalorder %s171, %s172
      %p181 = scmp.eq.s32.totalorder %s21, 0
      %p182 = por %p180, %p181
      %p183 = scmp.ne.s32.totalorder %s171, %s172
      %p184 = scmp.eq.s32.totalorder %s22, 1
      %p185 = por %p183, %p184
      %p187 = scmp.ne.s32.totalorder %s172, %s186
      %p188 = scmp.eq.s32.totalorder %s22, 0
      %p189 = por %p187, %p188
      %s190 = ssub.s32 %s23, %s35
      %p191 = scmp.eq.s32.totalorder %s190, 0
      %s193 = sadd.s32 %s192, 1
      %s194 = scalar_select %p191, %s192, %s193
      %p197 = pneg %p191
      %p198 = scmp.eq.s32.totalorder %s16, 1
      %p199 = por %p197, %p198
      %p200 = scmp.ne.s32.totalorder %s192, %s195
      %p201 = scmp.eq.s32.totalorder %s16, 0
      %p202 = por %p200, %p201
      %p203 = scmp.ne.s32.totalorder %s192, %s195
      %p204 = scmp.eq.s32.totalorder %s21, 1
      %p205 = por %p203, %p204
      %p206 = scmp.ne.s32.totalorder %s195, %s196
      %p207 = scmp.eq.s32.totalorder %s21, 0
      %p208 = por %p206, %p207
      %p209 = scmp.ne.s32.totalorder %s195, %s196
      %p210 = scmp.eq.s32.totalorder %s22, 1
      %p211 = por %p209, %p210
      %p213 = scmp.ne.s32.totalorder %s196, %s212
      %p214 = scmp.eq.s32.totalorder %s22, 0
      %p215 = por %p213, %p214
      %p216 = scmp.le.s32.totalorder 1, %s16
      %p217 = scmp.lt.s32.totalorder %s16, 3
      %p218 = pnand %p216, %p217
      %p219 = pneg %p218
      // Predicated region
      $region9: #{tpu_custom_call.1} parent=5 // pred_check
        _
      $region10: #{tpu_custom_call.1} parent=5 // pred_check_branch
        %221 = sbr.rel (%p218) target = $region12
      $region11: #{tpu_custom_call.1} parent=5 // pred_region
        %s222 = ssub.s32 %s16, 1
        // Predicated region
        $region13: #{tpu_custom_call.1} parent=11 // pred_check
          %p223 = pneg %p77
        $region14: #{tpu_custom_call.1} parent=11 // pred_check_branch
          %225 = sbr.rel (%p223) target = $region16
        $region15: #{tpu_custom_call.1} parent=11 // pred_region
          _
        $region16: #{tpu_custom_call.1} parent=11 // pred_fallthru
          _
        // Predicated region
        $region17: #{tpu_custom_call.1} parent=11 // pred_check
          %p226 = pneg %p98
        $region18: #{tpu_custom_call.1} parent=11 // pred_check_branch
          %228 = sbr.rel (%p226) target = $region20
        $region19: #{tpu_custom_call.1} parent=11 // pred_region
          _
        $region20: #{tpu_custom_call.1} parent=11 // pred_fallthru
          _
        // Predicated region
        $region21: #{tpu_custom_call.1} parent=11 // pred_check
          %p229 = pneg %p119
        $region22: #{tpu_custom_call.1} parent=11 // pred_check_branch
          %231 = sbr.rel (%p229) target = $region24
        $region23: #{tpu_custom_call.1} parent=11 // pred_region
          _
        $region24: #{tpu_custom_call.1} parent=11 // pred_fallthru
          _
        // Predicated region
        $region25: #{tpu_custom_call.1} parent=11 // pred_check
          %p232 = pneg %p140
        $region26: #{tpu_custom_call.1} parent=11 // pred_check_branch
          %234 = sbr.rel (%p232) target = $region28
        $region27: #{tpu_custom_call.1} parent=11 // pred_region
          _
        $region28: #{tpu_custom_call.1} parent=11 // pred_fallthru
          _
        // Predicated region
        $region29: #{tpu_custom_call.1} parent=11 // pred_check
          %p235 = pneg %p161
        $region30: #{tpu_custom_call.1} parent=11 // pred_check_branch
          %237 = sbr.rel (%p235) target = $region32
        $region31: #{tpu_custom_call.1} parent=11 // pred_region
          _
        $region32: #{tpu_custom_call.1} parent=11 // pred_fallthru
          _
        // Predicated region
        $region33: #{tpu_custom_call.1} parent=11 // pred_check
          %p238 = pneg %p182
        $region34: #{tpu_custom_call.1} parent=11 // pred_check_branch
          %240 = sbr.rel (%p238) target = $region36
        $region35: #{tpu_custom_call.1} parent=11 // pred_region
          _
        $region36: #{tpu_custom_call.1} parent=11 // pred_fallthru
          _
      $region12: #{tpu_custom_call.1} parent=5 // pred_fallthru
        _
      %p241 = scmp.lt.s32.totalorder %s16, 2
      // Predicated region
      $region37: #{tpu_custom_call.1} parent=5 // pred_check
        %p242 = pneg %p241
      $region38: #{tpu_custom_call.1} parent=5 // pred_check_branch
        %244 = sbr.rel (%p242) target = $region40
      $region39: #{tpu_custom_call.1} parent=5 // pred_region
        // Predicated region
        $region41: #{tpu_custom_call.1} parent=39 // pred_check
          %p245 = pneg %p50
        $region42: #{tpu_custom_call.1} parent=39 // pred_check_branch
          %247 = sbr.rel (%p245) target = $region44
        $region43: #{tpu_custom_call.1} parent=39 // pred_region
          %s248 = smul.u32 4, %s24
          %p249 = scmp.lt.s32.totalorder %s23, 1
          %s250 = scalar_select %p249, %s23, 1
          %p251 = scmp.lt.s32.totalorder %s248, 3
          %s252 = scalar_select %p251, %s248, 3
          %s253 = smul.addr %s250, 32
          %s254 = sadd.s32 %s252, %s253
          %s255 = smul.addr %s254, 4
          %s256 = scalar_lea.vmem %s0, %s255
          %s257 = smul.u32 4, %s24
        $region44: #{tpu_custom_call.1} parent=39 // pred_fallthru
          _
      $region40: #{tpu_custom_call.1} parent=5 // pred_fallthru
        _
      %p258 = scmp.le.s32.totalorder 1, %s16
      %p259 = scmp.lt.s32.totalorder %s16, 3
      %p260 = pnand %p258, %p259
      %p261 = pneg %p260
      // Predicated region
      $region45: #{tpu_custom_call.1} parent=5 // pred_check
        _
      $region46: #{tpu_custom_call.1} parent=5 // pred_check_branch
        %263 = sbr.rel (%p260) target = $region48
      $region47: #{tpu_custom_call.1} parent=5 // pred_region
        %s264 = ssub.s32 %s16, 1
        %s265 = smul.u32 4, %s26
        %p266 = scmp.lt.s32.totalorder %s25, 1
        %s267 = scalar_select %p266, %s25, 1
        %p268 = scmp.lt.s32.totalorder %s265, 3
        %s269 = scalar_select %p268, %s265, 3
        %s270 = smul.addr %s267, 32
        %s271 = sadd.s32 %s269, %s270
        %s272 = smul.addr %s271, 4
        %s273 = scalar_lea.vmem %s0, %s272
        %p274 = pneg %p56
        %p275 = pneg %p53
        %p276 = pneg %p77
        %p277 = pneg %p74
        %p278 = pneg %p98
        %p279 = pneg %p95
        %p280 = pneg %p119
        %p281 = pneg %p116
        %p282 = pneg %p140
        %p283 = pneg %p137
        %p284 = pneg %p161
        %p285 = pneg %p158
        %p286 = pneg %p182
        %p287 = pneg %p179
        %p288 = pneg %p208
        %p289 = pneg %p205
        %s290 = sand.u32 %s195, 1
        %s291 = scalar_lea.sflag [#allocation4], %s290
        %s292 = sand.u32 %s195, 1
        %s293 = scalar_lea.vmem [#allocation3], %s292
        %s294 = smul.u32 4, %s26
        %p295 = scmp.lt.s32.totalorder %s25, 1
        %s296 = scalar_select %p295, %s25, 1
        %p297 = scmp.lt.s32.totalorder %s294, 3
        %s298 = scalar_select %p297, %s294, 3
        %s299 = smul.addr %s296, 32
        %s300 = sadd.s32 %s298, %s299
        %s301 = smul.addr %s300, 4
        %s302 = scalar_lea.vmem %s0, %s301
        %s303 = smul.u32 4, %s26
        %p305 = scmp.eq.s32.totalorder %s26, 0
        // Predicated region
        $region49: #{tpu_custom_call.1} parent=47 // pred_check
          %p306 = pneg %p305
        $region50: #{tpu_custom_call.1} parent=47 // pred_check_branch
          %308 = sbr.rel (%p306) target = $region52
        $region51: #{tpu_custom_call.1} parent=47 // pred_region
          %v309 = vlaneseq
          %vm310 = vcmp.ge.s32.totalorder %v309, 0
          %vm311 = vcmp.lt.s32.totalorder %v309, 512
          %vm312 = vmand %vm310, %vm311
          %313 = vst.msk [vmem:[#allocation2] sm:$0xf] %vm312, -inf
        $region52: #{tpu_custom_call.1} parent=47 // pred_fallthru
          _
        %v314 = vld [vmem:[%s302] sm:$0xff]
        %v315 = vld [vmem:[%s302 + $0x8] sm:$0xff]
        %v316 = vld [vmem:[%s302 + $0x10] sm:$0xff]
        %v317 = vld [vmem:[%s302 + $0x18] sm:$0xff]
        %v318 = vld [vmem:[%s302 + $0x20] sm:$0xff]
        %v319 = vld [vmem:[%s302 + $0x28] sm:$0xff]
        %v320 = vld [vmem:[%s302 + $0x30] sm:$0xff]
        %v321 = vld [vmem:[%s302 + $0x38] sm:$0xff]
        %v322 = vld [vmem:[%s302 + $0x40] sm:$0xff]
        %v323 = vld [vmem:[%s302 + $0x48] sm:$0xff]
        %v324 = vld [vmem:[%s302 + $0x50] sm:$0xff]
        %v325 = vld [vmem:[%s302 + $0x58] sm:$0xff]
        %v326 = vld [vmem:[%s302 + $0x60] sm:$0xff]
        %v327 = vld [vmem:[%s302 + $0x68] sm:$0xff]
        %v328 = vld [vmem:[%s302 + $0x70] sm:$0xff]
        %v329 = vld [vmem:[%s302 + $0x78] sm:$0xff]
        %v330 = vld [vmem:[%s1] sm:$0xff]
        %v331 = vld [vmem:[%s1 + $0x8] sm:$0xff]
        %v332 = vld [vmem:[%s1 + $0x10] sm:$0xff]
        %v333 = vld [vmem:[%s1 + $0x18] sm:$0xff]
        %v334 = vld [vmem:[%s1 + $0x20] sm:$0xff]
        %v335 = vld [vmem:[%s1 + $0x28] sm:$0xff]
        %v336 = vld [vmem:[%s1 + $0x30] sm:$0xff]
        %v337 = vld [vmem:[%s1 + $0x38] sm:$0xff]
        %v338 = vld [vmem:[%s1 + $0x40] sm:$0xff]
        %v339 = vld [vmem:[%s1 + $0x48] sm:$0xff]
        %v340 = vld [vmem:[%s1 + $0x50] sm:$0xff]
        %v341 = vld [vmem:[%s1 + $0x58] sm:$0xff]
        %v342 = vld [vmem:[%s1 + $0x60] sm:$0xff]
        %v343 = vld [vmem:[%s1 + $0x68] sm:$0xff]
        %v344 = vld [vmem:[%s1 + $0x70] sm:$0xff]
        %v345 = vld [vmem:[%s1 + $0x78] sm:$0xff]
        %v362 = vunpack.c.l.b16 %v314
        %v363 = vunpack.c.h.b16 %v314
        %v364 = vunpack.c.l.b16 %v315
        %v365 = vunpack.c.h.b16 %v315
        %v366 = vunpack.c.l.b16 %v316
        %v367 = vunpack.c.h.b16 %v316
        %v368 = vunpack.c.l.b16 %v317
        %v369 = vunpack.c.h.b16 %v317
        %v370 = vunpack.c.l.b16 %v318
        %v371 = vunpack.c.h.b16 %v318
        %v372 = vunpack.c.l.b16 %v319
        %v373 = vunpack.c.h.b16 %v319
        %v374 = vunpack.c.l.b16 %v320
        %v375 = vunpack.c.h.b16 %v320
        %v376 = vunpack.c.l.b16 %v321
        %v377 = vunpack.c.h.b16 %v321
        %v378 = vunpack.c.l.b16 %v322
        %v379 = vunpack.c.h.b16 %v322
        %v380 = vunpack.c.l.b16 %v323
        %v381 = vunpack.c.h.b16 %v323
        %v382 = vunpack.c.l.b16 %v324
        %v383 = vunpack.c.h.b16 %v324
        %v384 = vunpack.c.l.b16 %v325
        %v385 = vunpack.c.h.b16 %v325
        %v386 = vunpack.c.l.b16 %v326
        %v387 = vunpack.c.h.b16 %v326
        %v388 = vunpack.c.l.b16 %v327
        %v389 = vunpack.c.h.b16 %v327
        %v390 = vunpack.c.l.b16 %v328
        %v391 = vunpack.c.h.b16 %v328
        %v392 = vunpack.c.l.b16 %v329
        %v393 = vunpack.c.h.b16 %v329
        %v394 = vpack.c.b16 %v366, %v362
        %v395 = vpack.c.b16 %v367, %v363
        %v396 = vpack.c.b16 %v368, %v364
        %v397 = vpack.c.b16 %v369, %v365
        %v398 = vpack.c.b16 %v374, %v370
        %v399 = vpack.c.b16 %v375, %v371
        %v400 = vpack.c.b16 %v376, %v372
        %v401 = vpack.c.b16 %v377, %v373
        %v402 = vpack.c.b16 %v382, %v378
        %v403 = vpack.c.b16 %v383, %v379
        %v404 = vpack.c.b16 %v384, %v380
        %v405 = vpack.c.b16 %v385, %v381
        %v406 = vpack.c.b16 %v390, %v386
        %v407 = vpack.c.b16 %v391, %v387
        %v408 = vpack.c.b16 %v392, %v388
        %v409 = vpack.c.b16 %v393, %v389
        %426 = vxpose.xlu0.c.b16.start [1/8] %v394, 128
        %427 = vxpose.xlu0.c.b16.cont [2/8] %v398, 128
        %428 = vxpose.xlu0.c.b16.cont [3/8] %v402, 128
        %429 = vxpose.xlu0.c.b16.cont [4/8] %v406, 128
        %430 = vxpose.xlu0.c.b16.cont [5/8] 0, 128
        %431 = vxpose.xlu0.c.b16.cont [6/8] 0, 128
        %432 = vxpose.xlu0.c.b16.cont [7/8] 0, 128
        %433 = vxpose.xlu0.c.b16.end [8/8] 0, 128
        %v434 = vpop.trf.xlu0
        %v435 = vpop.trf.xlu0
        %v436 = vpop.trf.xlu0
        %v437 = vpop.trf.xlu0
        %v438 = vpop.trf.xlu0
        %v439 = vpop.trf.xlu0
        %v440 = vpop.trf.xlu0
        %v441 = vpop.trf.xlu0
        %442 = vxpose.xlu0.c.b16.start [1/8] %v395, 128
        %443 = vxpose.xlu0.c.b16.cont [2/8] %v399, 128
        %444 = vxpose.xlu0.c.b16.cont [3/8] %v403, 128
        %445 = vxpose.xlu0.c.b16.cont [4/8] %v407, 128
        %446 = vxpose.xlu0.c.b16.cont [5/8] 0, 128
        %447 = vxpose.xlu0.c.b16.cont [6/8] 0, 128
        %448 = vxpose.xlu0.c.b16.cont [7/8] 0, 128
        %449 = vxpose.xlu0.c.b16.end [8/8] 0, 128
        %v450 = vpop.trf.xlu0
        %v451 = vpop.trf.xlu0
        %v452 = vpop.trf.xlu0
        %v453 = vpop.trf.xlu0
        %v454 = vpop.trf.xlu0
        %v455 = vpop.trf.xlu0
        %v456 = vpop.trf.xlu0
        %v457 = vpop.trf.xlu0
        %458 = vxpose.xlu0.c.b16.start [1/8] %v396, 128
        %459 = vxpose.xlu0.c.b16.cont [2/8] %v400, 128
        %460 = vxpose.xlu0.c.b16.cont [3/8] %v404, 128
        %461 = vxpose.xlu0.c.b16.cont [4/8] %v408, 128
        %462 = vxpose.xlu0.c.b16.cont [5/8] 0, 128
        %463 = vxpose.xlu0.c.b16.cont [6/8] 0, 128
        %464 = vxpose.xlu0.c.b16.cont [7/8] 0, 128
        %465 = vxpose.xlu0.c.b16.end [8/8] 0, 128
        %v466 = vpop.trf.xlu0
        %v467 = vpop.trf.xlu0
        %v468 = vpop.trf.xlu0
        %v469 = vpop.trf.xlu0
        %v470 = vpop.trf.xlu0
        %v471 = vpop.trf.xlu0
        %v472 = vpop.trf.xlu0
        %v473 = vpop.trf.xlu0
        %474 = vxpose.xlu0.c.b16.start [1/8] %v397, 128
        %475 = vxpose.xlu0.c.b16.cont [2/8] %v401, 128
        %476 = vxpose.xlu0.c.b16.cont [3/8] %v405, 128
        %477 = vxpose.xlu0.c.b16.cont [4/8] %v409, 128
        %478 = vxpose.xlu0.c.b16.cont [5/8] 0, 128
        %479 = vxpose.xlu0.c.b16.cont [6/8] 0, 128
        %480 = vxpose.xlu0.c.b16.cont [7/8] 0, 128
        %481 = vxpose.xlu0.c.b16.end [8/8] 0, 128
        %v482 = vpop.trf.xlu0
        %v483 = vpop.trf.xlu0
        %v484 = vpop.trf.xlu0
        %v485 = vpop.trf.xlu0
        %v486 = vpop.trf.xlu0
        %v487 = vpop.trf.xlu0
        %v488 = vpop.trf.xlu0
        %v489 = vpop.trf.xlu0
        %v506 = vunpack.c.l.b16 %v330
        %v507 = vunpack.c.h.b16 %v330
        %v508 = vunpack.c.l.b16 %v331
        %v509 = vunpack.c.h.b16 %v331
        %v510 = vunpack.c.l.b16 %v332
        %v511 = vunpack.c.h.b16 %v332
        %v512 = vunpack.c.l.b16 %v333
        %v513 = vunpack.c.h.b16 %v333
        %v514 = vunpack.c.l.b16 %v334
        %v515 = vunpack.c.h.b16 %v334
        %v516 = vunpack.c.l.b16 %v335
        %v517 = vunpack.c.h.b16 %v335
        %v518 = vunpack.c.l.b16 %v336
        %v519 = vunpack.c.h.b16 %v336
        %v520 = vunpack.c.l.b16 %v337
        %v521 = vunpack.c.h.b16 %v337
        %v522 = vunpack.c.l.b16 %v338
        %v523 = vunpack.c.h.b16 %v338
        %v524 = vunpack.c.l.b16 %v339
        %v525 = vunpack.c.h.b16 %v339
        %v526 = vunpack.c.l.b16 %v340
        %v527 = vunpack.c.h.b16 %v340
        %v528 = vunpack.c.l.b16 %v341
        %v529 = vunpack.c.h.b16 %v341
        %v530 = vunpack.c.l.b16 %v342
        %v531 = vunpack.c.h.b16 %v342
        %v532 = vunpack.c.l.b16 %v343
        %v533 = vunpack.c.h.b16 %v343
        %v534 = vunpack.c.l.b16 %v344
        %v535 = vunpack.c.h.b16 %v344
        %v536 = vunpack.c.l.b16 %v345
        %v537 = vunpack.c.h.b16 %v345
        %v538 = vpack.c.b16 %v510, %v506
        %v539 = vpack.c.b16 %v511, %v507
        %v540 = vpack.c.b16 %v512, %v508
        %v541 = vpack.c.b16 %v513, %v509
        %v542 = vpack.c.b16 %v518, %v514
        %v543 = vpack.c.b16 %v519, %v515
        %v544 = vpack.c.b16 %v520, %v516
        %v545 = vpack.c.b16 %v521, %v517
        %v546 = vpack.c.b16 %v526, %v522
        %v547 = vpack.c.b16 %v527, %v523
        %v548 = vpack.c.b16 %v528, %v524
        %v549 = vpack.c.b16 %v529, %v525
        %v550 = vpack.c.b16 %v534, %v530
        %v551 = vpack.c.b16 %v535, %v531
        %v552 = vpack.c.b16 %v536, %v532
        %v553 = vpack.c.b16 %v537, %v533
        %vm570 = vcmask 523264
        %v572 = vsel %vm570, %v434, 0
        %v575 = vsel %vm570, %v435, 0
        %v578 = vsel %vm570, %v436, 0
        %v581 = vsel %vm570, %v437, 0
        %v584 = vsel %vm570, %v438, 0
        %v587 = vsel %vm570, %v439, 0
        %v590 = vsel %vm570, %v440, 0
        %v593 = vsel %vm570, %v441, 0
        %v596 = vsel %vm570, %v450, 0
        %v599 = vsel %vm570, %v451, 0
        %v602 = vsel %vm570, %v452, 0
        %v605 = vsel %vm570, %v453, 0
        %v608 = vsel %vm570, %v454, 0
        %v611 = vsel %vm570, %v455, 0
        %v614 = vsel %vm570, %v456, 0
        %v617 = vsel %vm570, %v457, 0
        %v620 = vsel %vm570, %v466, 0
        %v623 = vsel %vm570, %v467, 0
        %v626 = vsel %vm570, %v468, 0
        %v629 = vsel %vm570, %v469, 0
        %v632 = vsel %vm570, %v470, 0
        %v635 = vsel %vm570, %v471, 0
        %v638 = vsel %vm570, %v472, 0
        %v641 = vsel %vm570, %v473, 0
        %v644 = vsel %vm570, %v482, 0
        %v647 = vsel %vm570, %v483, 0
        %v650 = vsel %vm570, %v484, 0
        %v653 = vsel %vm570, %v485, 0
        %v656 = vsel %vm570, %v486, 0
        %v659 = vsel %vm570, %v487, 0
        %v662 = vsel %vm570, %v488, 0
        %v665 = vsel %vm570, %v489, 0
        %667 = vmatprep.subr.bf16.mxu0 0
        %668 = vmatpush1.bf16.msra.mxu0 0
        %669 = vmatprep.subr.bf16.mxu0 0
        %670 = vmatpush1.bf16.msra.mxu0 0
        %671 = vmatprep.subr.bf16.mxu0 0
        %672 = vmatpush1.bf16.msra.mxu0 0
        %673 = vmatprep.subr.bf16.mxu0 0
        %674 = vmatpush1.bf16.msra.mxu0 0
        %675 = vmatprep.subr.bf16.mxu0 %v551
        %676 = vmatpush1.bf16.msra.mxu0 %v550
        %677 = vmatprep.subr.bf16.mxu0 %v547
        %678 = vmatpush1.bf16.msra.mxu0 %v546
        %679 = vmatprep.subr.bf16.mxu0 %v543
        %680 = vmatpush1.bf16.msra.mxu0 %v542
        %681 = vmatprep.subr.bf16.mxu0 %v539
        %682 = vmatpush1.bf16.msra.mxu0 %v538
        %683 = vmatprep.subr.bf16.mxu0 0
        %684 = vmatpush2.bf16.msra.mxu0 0
        %685 = vmatprep.subr.bf16.mxu0 0
        %686 = vmatpush2.bf16.msra.mxu0 0
        %687 = vmatprep.subr.bf16.mxu0 0
        %688 = vmatpush2.bf16.msra.mxu0 0
        %689 = vmatprep.subr.bf16.mxu0 0
        %690 = vmatpush2.bf16.msra.mxu0 0
        %691 = vmatprep.subr.bf16.mxu0 0
        %692 = vmatpush2.bf16.msra.mxu0 0
        %693 = vmatprep.subr.bf16.mxu0 0
        %694 = vmatpush2.bf16.msra.mxu0 0
        %695 = vmatprep.subr.bf16.mxu0 0
        %696 = vmatpush2.bf16.msra.mxu0 0
        %697 = vmatprep.subr.bf16.mxu0 0
        %698 = vmatpush2.bf16.msra.mxu0 0
        %699 = vmatprep.mubr.bf16.mxu0 0
        %700 = vmatmul.mubr.bf16.gmra.mxu0 %v572
        %v701 = vpop.f32.mrf.mxu0
        %v702 = vadd.f32 0.0, %v701
        %v703 = vpop.f32.mrf.mxu0
        %v704 = vadd.f32 0.0, %v703
        %v705 = vpop.f32.mrf.mxu0
        %v706 = vadd.f32 0.0, %v705
        %v707 = vpop.f32.mrf.mxu0
        %v708 = vadd.f32 0.0, %v707
        %709 = vmatprep.mubr.bf16.mxu0 0
        %710 = vmatmul.mubr.bf16.gmra.mxu0 %v575
        %v711 = vpop.f32.mrf.mxu0
        %v712 = vadd.f32 0.0, %v711
        %v713 = vpop.f32.mrf.mxu0
        %v714 = vadd.f32 0.0, %v713
        %v715 = vpop.f32.mrf.mxu0
        %v716 = vadd.f32 0.0, %v715
        %v717 = vpop.f32.mrf.mxu0
        %v718 = vadd.f32 0.0, %v717
        %719 = vmatprep.mubr.bf16.mxu0 0
        %720 = vmatmul.mubr.bf16.gmra.mxu0 %v578
        %v721 = vpop.f32.mrf.mxu0
        %v722 = vadd.f32 0.0, %v721
        %v723 = vpop.f32.mrf.mxu0
        %v724 = vadd.f32 0.0, %v723
        %v725 = vpop.f32.mrf.mxu0
        %v726 = vadd.f32 0.0, %v725
        %v727 = vpop.f32.mrf.mxu0
        %v728 = vadd.f32 0.0, %v727
        %729 = vmatprep.mubr.bf16.mxu0 0
        %730 = vmatmul.mubr.bf16.gmra.mxu0 %v581
        %v731 = vpop.f32.mrf.mxu0
        %v732 = vadd.f32 0.0, %v731
        %v733 = vpop.f32.mrf.mxu0
        %v734 = vadd.f32 0.0, %v733
        %v735 = vpop.f32.mrf.mxu0
        %v736 = vadd.f32 0.0, %v735
        %v737 = vpop.f32.mrf.mxu0
        %v738 = vadd.f32 0.0, %v737
        %739 = vmatprep.mubr.bf16.mxu0 0
        %740 = vmatmul.mubr.bf16.gmra.mxu0 %v584
        %v741 = vpop.f32.mrf.mxu0
        %v742 = vadd.f32 0.0, %v741
        %v743 = vpop.f32.mrf.mxu0
        %v744 = vadd.f32 0.0, %v743
        %v745 = vpop.f32.mrf.mxu0
        %v746 = vadd.f32 0.0, %v745
        %v747 = vpop.f32.mrf.mxu0
        %v748 = vadd.f32 0.0, %v747
        %749 = vmatprep.mubr.bf16.mxu0 0
        %750 = vmatmul.mubr.bf16.gmra.mxu0 %v587
        %v751 = vpop.f32.mrf.mxu0
        %v752 = vadd.f32 0.0, %v751
        %v753 = vpop.f32.mrf.mxu0
        %v754 = vadd.f32 0.0, %v753
        %v755 = vpop.f32.mrf.mxu0
        %v756 = vadd.f32 0.0, %v755
        %v757 = vpop.f32.mrf.mxu0
        %v758 = vadd.f32 0.0, %v757
        %759 = vmatprep.mubr.bf16.mxu0 0
        %760 = vmatmul.mubr.bf16.gmra.mxu0 %v590
        %v761 = vpop.f32.mrf.mxu0
        %v762 = vadd.f32 0.0, %v761
        %v763 = vpop.f32.mrf.mxu0
        %v764 = vadd.f32 0.0, %v763
        %v765 = vpop.f32.mrf.mxu0
        %v766 = vadd.f32 0.0, %v765
        %v767 = vpop.f32.mrf.mxu0
        %v768 = vadd.f32 0.0, %v767
        %769 = vmatprep.mubr.bf16.mxu0 0
        %770 = vmatmul.mubr.bf16.gmra.mxu0 %v593
        %v771 = vpop.f32.mrf.mxu0
        %v772 = vadd.f32 0.0, %v771
        %v773 = vpop.f32.mrf.mxu0
        %v774 = vadd.f32 0.0, %v773
        %v775 = vpop.f32.mrf.mxu0
        %v776 = vadd.f32 0.0, %v775
        %v777 = vpop.f32.mrf.mxu0
        %v778 = vadd.f32 0.0, %v777
        %779 = vmatprep.mubr.bf16.mxu0 0
        %780 = vmatmul.mubr.bf16.gmra.mxu0 %v596
        %v781 = vpop.f32.mrf.mxu0
        %v782 = vadd.f32 0.0, %v781
        %v783 = vpop.f32.mrf.mxu0
        %v784 = vadd.f32 0.0, %v783
        %v785 = vpop.f32.mrf.mxu0
        %v786 = vadd.f32 0.0, %v785
        %v787 = vpop.f32.mrf.mxu0
        %v788 = vadd.f32 0.0, %v787
        %789 = vmatprep.mubr.bf16.mxu0 0
        %790 = vmatmul.mubr.bf16.gmra.mxu0 %v599
        %v791 = vpop.f32.mrf.mxu0
        %v792 = vadd.f32 0.0, %v791
        %v793 = vpop.f32.mrf.mxu0
        %v794 = vadd.f32 0.0, %v793
        %v795 = vpop.f32.mrf.mxu0
        %v796 = vadd.f32 0.0, %v795
        %v797 = vpop.f32.mrf.mxu0
        %v798 = vadd.f32 0.0, %v797
        %799 = vmatprep.mubr.bf16.mxu0 0
        %800 = vmatmul.mubr.bf16.gmra.mxu0 %v602
        %v801 = vpop.f32.mrf.mxu0
        %v802 = vadd.f32 0.0, %v801
        %v803 = vpop.f32.mrf.mxu0
        %v804 = vadd.f32 0.0, %v803
        %v805 = vpop.f32.mrf.mxu0
        %v806 = vadd.f32 0.0, %v805
        %v807 = vpop.f32.mrf.mxu0
        %v808 = vadd.f32 0.0, %v807
        %809 = vmatprep.mubr.bf16.mxu0 0
        %810 = vmatmul.mubr.bf16.gmra.mxu0 %v605
        %v811 = vpop.f32.mrf.mxu0
        %v812 = vadd.f32 0.0, %v811
        %v813 = vpop.f32.mrf.mxu0
        %v814 = vadd.f32 0.0, %v813
        %v815 = vpop.f32.mrf.mxu0
        %v816 = vadd.f32 0.0, %v815
        %v817 = vpop.f32.mrf.mxu0
        %v818 = vadd.f32 0.0, %v817
        %819 = vmatprep.mubr.bf16.mxu0 0
        %820 = vmatmul.mubr.bf16.gmra.mxu0 %v608
        %v821 = vpop.f32.mrf.mxu0
        %v822 = vadd.f32 0.0, %v821
        %v823 = vpop.f32.mrf.mxu0
        %v824 = vadd.f32 0.0, %v823
        %v825 = vpop.f32.mrf.mxu0
        %v826 = vadd.f32 0.0, %v825
        %v827 = vpop.f32.mrf.mxu0
        %v828 = vadd.f32 0.0, %v827
        %829 = vmatprep.mubr.bf16.mxu0 0
        %830 = vmatmul.mubr.bf16.gmra.mxu0 %v611
        %v831 = vpop.f32.mrf.mxu0
        %v832 = vadd.f32 0.0, %v831
        %v833 = vpop.f32.mrf.mxu0
        %v834 = vadd.f32 0.0, %v833
        %v835 = vpop.f32.mrf.mxu0
        %v836 = vadd.f32 0.0, %v835
        %v837 = vpop.f32.mrf.mxu0
        %v838 = vadd.f32 0.0, %v837
        %839 = vmatprep.mubr.bf16.mxu0 0
        %840 = vmatmul.mubr.bf16.gmra.mxu0 %v614
        %v841 = vpop.f32.mrf.mxu0
        %v842 = vadd.f32 0.0, %v841
        %v843 = vpop.f32.mrf.mxu0
        %v844 = vadd.f32 0.0, %v843
        %v845 = vpop.f32.mrf.mxu0
        %v846 = vadd.f32 0.0, %v845
        %v847 = vpop.f32.mrf.mxu0
        %v848 = vadd.f32 0.0, %v847
        %849 = vmatprep.mubr.bf16.mxu0 0
        %850 = vmatmul.mubr.bf16.gmra.mxu0 %v617
        %v851 = vpop.f32.mrf.mxu0
        %v852 = vadd.f32 0.0, %v851
        %v853 = vpop.f32.mrf.mxu0
        %v854 = vadd.f32 0.0, %v853
        %v855 = vpop.f32.mrf.mxu0
        %v856 = vadd.f32 0.0, %v855
        %v857 = vpop.f32.mrf.mxu0
        %v858 = vadd.f32 0.0, %v857
        %859 = vmatprep.mubr.bf16.mxu0 0
        %860 = vmatmul.mubr.bf16.gmra.mxu0 %v620
        %v861 = vpop.f32.mrf.mxu0
        %v862 = vadd.f32 0.0, %v861
        %v863 = vpop.f32.mrf.mxu0
        %v864 = vadd.f32 0.0, %v863
        %v865 = vpop.f32.mrf.mxu0
        %v866 = vadd.f32 0.0, %v865
        %v867 = vpop.f32.mrf.mxu0
        %v868 = vadd.f32 0.0, %v867
        %869 = vmatprep.mubr.bf16.mxu0 0
        %870 = vmatmul.mubr.bf16.gmra.mxu0 %v623
        %v871 = vpop.f32.mrf.mxu0
        %v872 = vadd.f32 0.0, %v871
        %v873 = vpop.f32.mrf.mxu0
        %v874 = vadd.f32 0.0, %v873
        %v875 = vpop.f32.mrf.mxu0
        %v876 = vadd.f32 0.0, %v875
        %v877 = vpop.f32.mrf.mxu0
        %v878 = vadd.f32 0.0, %v877
        %879 = vmatprep.mubr.bf16.mxu0 0
        %880 = vmatmul.mubr.bf16.gmra.mxu0 %v626
        %v881 = vpop.f32.mrf.mxu0
        %v882 = vadd.f32 0.0, %v881
        %v883 = vpop.f32.mrf.mxu0
        %v884 = vadd.f32 0.0, %v883
        %v885 = vpop.f32.mrf.mxu0
        %v886 = vadd.f32 0.0, %v885
        %v887 = vpop.f32.mrf.mxu0
        %v888 = vadd.f32 0.0, %v887
        %889 = vmatprep.mubr.bf16.mxu0 0
        %890 = vmatmul.mubr.bf16.gmra.mxu0 %v629
        %v891 = vpop.f32.mrf.mxu0
        %v892 = vadd.f32 0.0, %v891
        %v893 = vpop.f32.mrf.mxu0
        %v894 = vadd.f32 0.0, %v893
        %v895 = vpop.f32.mrf.mxu0
        %v896 = vadd.f32 0.0, %v895
        %v897 = vpop.f32.mrf.mxu0
        %v898 = vadd.f32 0.0, %v897
        %899 = vmatprep.mubr.bf16.mxu0 0
        %900 = vmatmul.mubr.bf16.gmra.mxu0 %v632
        %v901 = vpop.f32.mrf.mxu0
        %v902 = vadd.f32 0.0, %v901
        %v903 = vpop.f32.mrf.mxu0
        %v904 = vadd.f32 0.0, %v903
        %v905 = vpop.f32.mrf.mxu0
        %v906 = vadd.f32 0.0, %v905
        %v907 = vpop.f32.mrf.mxu0
        %v908 = vadd.f32 0.0, %v907
        %909 = vmatprep.mubr.bf16.mxu0 0
        %910 = vmatmul.mubr.bf16.gmra.mxu0 %v635
        %v911 = vpop.f32.mrf.mxu0
        %v912 = vadd.f32 0.0, %v911
        %v913 = vpop.f32.mrf.mxu0
        %v914 = vadd.f32 0.0, %v913
        %v915 = vpop.f32.mrf.mxu0
        %v916 = vadd.f32 0.0, %v915
        %v917 = vpop.f32.mrf.mxu0
        %v918 = vadd.f32 0.0, %v917
        %919 = vmatprep.mubr.bf16.mxu0 0
        %920 = vmatmul.mubr.bf16.gmra.mxu0 %v638
        %v921 = vpop.f32.mrf.mxu0
        %v922 = vadd.f32 0.0, %v921
        %v923 = vpop.f32.mrf.mxu0
        %v924 = vadd.f32 0.0, %v923
        %v925 = vpop.f32.mrf.mxu0
        %v926 = vadd.f32 0.0, %v925
        %v927 = vpop.f32.mrf.mxu0
        %v928 = vadd.f32 0.0, %v927
        %929 = vmatprep.mubr.bf16.mxu0 0
        %930 = vmatmul.mubr.bf16.gmra.mxu0 %v641
        %v931 = vpop.f32.mrf.mxu0
        %v932 = vadd.f32 0.0, %v931
        %v933 = vpop.f32.mrf.mxu0
        %v934 = vadd.f32 0.0, %v933
        %v935 = vpop.f32.mrf.mxu0
        %v936 = vadd.f32 0.0, %v935
        %v937 = vpop.f32.mrf.mxu0
        %v938 = vadd.f32 0.0, %v937
        %939 = vmatprep.mubr.bf16.mxu0 0
        %940 = vmatmul.mubr.bf16.gmra.mxu0 %v644
        %v941 = vpop.f32.mrf.mxu0
        %v942 = vadd.f32 0.0, %v941
        %v943 = vpop.f32.mrf.mxu0
        %v944 = vadd.f32 0.0, %v943
        %v945 = vpop.f32.mrf.mxu0
        %v946 = vadd.f32 0.0, %v945
        %v947 = vpop.f32.mrf.mxu0
        %v948 = vadd.f32 0.0, %v947
        %949 = vmatprep.mubr.bf16.mxu0 0
        %950 = vmatmul.mubr.bf16.gmra.mxu0 %v647
        %v951 = vpop.f32.mrf.mxu0
        %v952 = vadd.f32 0.0, %v951
        %v953 = vpop.f32.mrf.mxu0
        %v954 = vadd.f32 0.0, %v953
        %v955 = vpop.f32.mrf.mxu0
        %v956 = vadd.f32 0.0, %v955
        %v957 = vpop.f32.mrf.mxu0
        %v958 = vadd.f32 0.0, %v957
        %959 = vmatprep.mubr.bf16.mxu0 0
        %960 = vmatmul.mubr.bf16.gmra.mxu0 %v650
        %v961 = vpop.f32.mrf.mxu0
        %v962 = vadd.f32 0.0, %v961
        %v963 = vpop.f32.mrf.mxu0
        %v964 = vadd.f32 0.0, %v963
        %v965 = vpop.f32.mrf.mxu0
        %v966 = vadd.f32 0.0, %v965
        %v967 = vpop.f32.mrf.mxu0
        %v968 = vadd.f32 0.0, %v967
        %969 = vmatprep.mubr.bf16.mxu0 0
        %970 = vmatmul.mubr.bf16.gmra.mxu0 %v653
        %v971 = vpop.f32.mrf.mxu0
        %v972 = vadd.f32 0.0, %v971
        %v973 = vpop.f32.mrf.mxu0
        %v974 = vadd.f32 0.0, %v973
        %v975 = vpop.f32.mrf.mxu0
        %v976 = vadd.f32 0.0, %v975
        %v977 = vpop.f32.mrf.mxu0
        %v978 = vadd.f32 0.0, %v977
        %979 = vmatprep.mubr.bf16.mxu0 0
        %980 = vmatmul.mubr.bf16.gmra.mxu0 %v656
        %v981 = vpop.f32.mrf.mxu0
        %v982 = vadd.f32 0.0, %v981
        %v983 = vpop.f32.mrf.mxu0
        %v984 = vadd.f32 0.0, %v983
        %v985 = vpop.f32.mrf.mxu0
        %v986 = vadd.f32 0.0, %v985
        %v987 = vpop.f32.mrf.mxu0
        %v988 = vadd.f32 0.0, %v987
        %989 = vmatprep.mubr.bf16.mxu0 0
        %990 = vmatmul.mubr.bf16.gmra.mxu0 %v659
        %v991 = vpop.f32.mrf.mxu0
        %v992 = vadd.f32 0.0, %v991
        %v993 = vpop.f32.mrf.mxu0
        %v994 = vadd.f32 0.0, %v993
        %v995 = vpop.f32.mrf.mxu0
        %v996 = vadd.f32 0.0, %v995
        %v997 = vpop.f32.mrf.mxu0
        %v998 = vadd.f32 0.0, %v997
        %999 = vmatprep.mubr.bf16.mxu0 0
        %1000 = vmatmul.mubr.bf16.gmra.mxu0 %v662
        %v1001 = vpop.f32.mrf.mxu0
        %v1002 = vadd.f32 0.0, %v1001
        %v1003 = vpop.f32.mrf.mxu0
        %v1004 = vadd.f32 0.0, %v1003
        %v1005 = vpop.f32.mrf.mxu0
        %v1006 = vadd.f32 0.0, %v1005
        %v1007 = vpop.f32.mrf.mxu0
        %v1008 = vadd.f32 0.0, %v1007
        %1009 = vmatprep.mubr.bf16.mxu0 0
        %1010 = vmatmul.mubr.bf16.gmra.mxu0 %v665
        %v1011 = vpop.f32.mrf.mxu0
        %v1012 = vadd.f32 0.0, %v1011
        %v1013 = vpop.f32.mrf.mxu0
        %v1014 = vadd.f32 0.0, %v1013
        %v1015 = vpop.f32.mrf.mxu0
        %v1016 = vadd.f32 0.0, %v1015
        %v1017 = vpop.f32.mrf.mxu0
        %v1018 = vadd.f32 0.0, %v1017
        %1019 = vdwg.mxu0
        %1020 = vmatprep.subr.bf16.mxu0 0
        %1021 = vmatpush1.bf16.msra.mxu0 0
        %1022 = vmatprep.subr.bf16.mxu0 0
        %1023 = vmatpush1.bf16.msra.mxu0 0
        %1024 = vmatprep.subr.bf16.mxu0 0
        %1025 = vmatpush1.bf16.msra.mxu0 0
        %1026 = vmatprep.subr.bf16.mxu0 0
        %1027 = vmatpush1.bf16.msra.mxu0 0
        %1028 = vmatprep.subr.bf16.mxu0 %v553
        %1029 = vmatpush1.bf16.msra.mxu0 %v552
        %1030 = vmatprep.subr.bf16.mxu0 %v549
        %1031 = vmatpush1.bf16.msra.mxu0 %v548
        %1032 = vmatprep.subr.bf16.mxu0 %v545
        %1033 = vmatpush1.bf16.msra.mxu0 %v544
        %1034 = vmatprep.subr.bf16.mxu0 %v541
        %1035 = vmatpush1.bf16.msra.mxu0 %v540
        %1036 = vmatprep.subr.bf16.mxu0 0
        %1037 = vmatpush2.bf16.msra.mxu0 0
        %1038 = vmatprep.subr.bf16.mxu0 0
        %1039 = vmatpush2.bf16.msra.mxu0 0
        %1040 = vmatprep.subr.bf16.mxu0 0
        %1041 = vmatpush2.bf16.msra.mxu0 0
        %1042 = vmatprep.subr.bf16.mxu0 0
        %1043 = vmatpush2.bf16.msra.mxu0 0
        %1044 = vmatprep.subr.bf16.mxu0 0
        %1045 = vmatpush2.bf16.msra.mxu0 0
        %1046 = vmatprep.subr.bf16.mxu0 0
        %1047 = vmatpush2.bf16.msra.mxu0 0
        %1048 = vmatprep.subr.bf16.mxu0 0
        %1049 = vmatpush2.bf16.msra.mxu0 0
        %1050 = vmatprep.subr.bf16.mxu0 0
        %1051 = vmatpush2.bf16.msra.mxu0 0
        %1052 = vmatprep.mubr.bf16.mxu0 0
        %1053 = vmatmul.mubr.bf16.gmra.mxu0 %v572
        %v1054 = vpop.f32.mrf.mxu0
        %v1055 = vadd.f32 0.0, %v1054
        %v1056 = vpop.f32.mrf.mxu0
        %v1057 = vadd.f32 0.0, %v1056
        %v1058 = vpop.f32.mrf.mxu0
        %v1059 = vadd.f32 0.0, %v1058
        %v1060 = vpop.f32.mrf.mxu0
        %v1061 = vadd.f32 0.0, %v1060
        %1062 = vmatprep.mubr.bf16.mxu0 0
        %1063 = vmatmul.mubr.bf16.gmra.mxu0 %v575
        %v1064 = vpop.f32.mrf.mxu0
        %v1065 = vadd.f32 0.0, %v1064
        %v1066 = vpop.f32.mrf.mxu0
        %v1067 = vadd.f32 0.0, %v1066
        %v1068 = vpop.f32.mrf.mxu0
        %v1069 = vadd.f32 0.0, %v1068
        %v1070 = vpop.f32.mrf.mxu0
        %v1071 = vadd.f32 0.0, %v1070
        %1072 = vmatprep.mubr.bf16.mxu0 0
        %1073 = vmatmul.mubr.bf16.gmra.mxu0 %v578
        %v1074 = vpop.f32.mrf.mxu0
        %v1075 = vadd.f32 0.0, %v1074
        %v1076 = vpop.f32.mrf.mxu0
        %v1077 = vadd.f32 0.0, %v1076
        %v1078 = vpop.f32.mrf.mxu0
        %v1079 = vadd.f32 0.0, %v1078
        %v1080 = vpop.f32.mrf.mxu0
        %v1081 = vadd.f32 0.0, %v1080
        %1082 = vmatprep.mubr.bf16.mxu0 0
        %1083 = vmatmul.mubr.bf16.gmra.mxu0 %v581
        %v1084 = vpop.f32.mrf.mxu0
        %v1085 = vadd.f32 0.0, %v1084
        %v1086 = vpop.f32.mrf.mxu0
        %v1087 = vadd.f32 0.0, %v1086
        %v1088 = vpop.f32.mrf.mxu0
        %v1089 = vadd.f32 0.0, %v1088
        %v1090 = vpop.f32.mrf.mxu0
        %v1091 = vadd.f32 0.0, %v1090
        %1092 = vmatprep.mubr.bf16.mxu0 0
        %1093 = vmatmul.mubr.bf16.gmra.mxu0 %v584
        %v1094 = vpop.f32.mrf.mxu0
        %v1095 = vadd.f32 0.0, %v1094
        %v1096 = vpop.f32.mrf.mxu0
        %v1097 = vadd.f32 0.0, %v1096
        %v1098 = vpop.f32.mrf.mxu0
        %v1099 = vadd.f32 0.0, %v1098
        %v1100 = vpop.f32.mrf.mxu0
        %v1101 = vadd.f32 0.0, %v1100
        %1102 = vmatprep.mubr.bf16.mxu0 0
        %1103 = vmatmul.mubr.bf16.gmra.mxu0 %v587
        %v1104 = vpop.f32.mrf.mxu0
        %v1105 = vadd.f32 0.0, %v1104
        %v1106 = vpop.f32.mrf.mxu0
        %v1107 = vadd.f32 0.0, %v1106
        %v1108 = vpop.f32.mrf.mxu0
        %v1109 = vadd.f32 0.0, %v1108
        %v1110 = vpop.f32.mrf.mxu0
        %v1111 = vadd.f32 0.0, %v1110
        %1112 = vmatprep.mubr.bf16.mxu0 0
        %1113 = vmatmul.mubr.bf16.gmra.mxu0 %v590
        %v1114 = vpop.f32.mrf.mxu0
        %v1115 = vadd.f32 0.0, %v1114
        %v1116 = vpop.f32.mrf.mxu0
        %v1117 = vadd.f32 0.0, %v1116
        %v1118 = vpop.f32.mrf.mxu0
        %v1119 = vadd.f32 0.0, %v1118
        %v1120 = vpop.f32.mrf.mxu0
        %v1121 = vadd.f32 0.0, %v1120
        %1122 = vmatprep.mubr.bf16.mxu0 0
        %1123 = vmatmul.mubr.bf16.gmra.mxu0 %v593
        %v1124 = vpop.f32.mrf.mxu0
        %v1125 = vadd.f32 0.0, %v1124
        %v1126 = vpop.f32.mrf.mxu0
        %v1127 = vadd.f32 0.0, %v1126
        %v1128 = vpop.f32.mrf.mxu0
        %v1129 = vadd.f32 0.0, %v1128
        %v1130 = vpop.f32.mrf.mxu0
        %v1131 = vadd.f32 0.0, %v1130
        %1132 = vmatprep.mubr.bf16.mxu0 0
        %1133 = vmatmul.mubr.bf16.gmra.mxu0 %v596
        %v1134 = vpop.f32.mrf.mxu0
        %v1135 = vadd.f32 0.0, %v1134
        %v1136 = vpop.f32.mrf.mxu0
        %v1137 = vadd.f32 0.0, %v1136
        %v1138 = vpop.f32.mrf.mxu0
        %v1139 = vadd.f32 0.0, %v1138
        %v1140 = vpop.f32.mrf.mxu0
        %v1141 = vadd.f32 0.0, %v1140
        %1142 = vmatprep.mubr.bf16.mxu0 0
        %1143 = vmatmul.mubr.bf16.gmra.mxu0 %v599
        %v1144 = vpop.f32.mrf.mxu0
        %v1145 = vadd.f32 0.0, %v1144
        %v1146 = vpop.f32.mrf.mxu0
        %v1147 = vadd.f32 0.0, %v1146
        %v1148 = vpop.f32.mrf.mxu0
        %v1149 = vadd.f32 0.0, %v1148
        %v1150 = vpop.f32.mrf.mxu0
        %v1151 = vadd.f32 0.0, %v1150
        %1152 = vmatprep.mubr.bf16.mxu0 0
        %1153 = vmatmul.mubr.bf16.gmra.mxu0 %v602
        %v1154 = vpop.f32.mrf.mxu0
        %v1155 = vadd.f32 0.0, %v1154
        %v1156 = vpop.f32.mrf.mxu0
        %v1157 = vadd.f32 0.0, %v1156
        %v1158 = vpop.f32.mrf.mxu0
        %v1159 = vadd.f32 0.0, %v1158
        %v1160 = vpop.f32.mrf.mxu0
        %v1161 = vadd.f32 0.0, %v1160
        %1162 = vmatprep.mubr.bf16.mxu0 0
        %1163 = vmatmul.mubr.bf16.gmra.mxu0 %v605
        %v1164 = vpop.f32.mrf.mxu0
        %v1165 = vadd.f32 0.0, %v1164
        %v1166 = vpop.f32.mrf.mxu0
        %v1167 = vadd.f32 0.0, %v1166
        %v1168 = vpop.f32.mrf.mxu0
        %v1169 = vadd.f32 0.0, %v1168
        %v1170 = vpop.f32.mrf.mxu0
        %v1171 = vadd.f32 0.0, %v1170
        %1172 = vmatprep.mubr.bf16.mxu0 0
        %1173 = vmatmul.mubr.bf16.gmra.mxu0 %v608
        %v1174 = vpop.f32.mrf.mxu0
        %v1175 = vadd.f32 0.0, %v1174
        %v1176 = vpop.f32.mrf.mxu0
        %v1177 = vadd.f32 0.0, %v1176
        %v1178 = vpop.f32.mrf.mxu0
        %v1179 = vadd.f32 0.0, %v1178
        %v1180 = vpop.f32.mrf.mxu0
        %v1181 = vadd.f32 0.0, %v1180
        %1182 = vmatprep.mubr.bf16.mxu0 0
        %1183 = vmatmul.mubr.bf16.gmra.mxu0 %v611
        %v1184 = vpop.f32.mrf.mxu0
        %v1185 = vadd.f32 0.0, %v1184
        %v1186 = vpop.f32.mrf.mxu0
        %v1187 = vadd.f32 0.0, %v1186
        %v1188 = vpop.f32.mrf.mxu0
        %v1189 = vadd.f32 0.0, %v1188
        %v1190 = vpop.f32.mrf.mxu0
        %v1191 = vadd.f32 0.0, %v1190
        %1192 = vmatprep.mubr.bf16.mxu0 0
        %1193 = vmatmul.mubr.bf16.gmra.mxu0 %v614
        %v1194 = vpop.f32.mrf.mxu0
        %v1195 = vadd.f32 0.0, %v1194
        %v1196 = vpop.f32.mrf.mxu0
        %v1197 = vadd.f32 0.0, %v1196
        %v1198 = vpop.f32.mrf.mxu0
        %v1199 = vadd.f32 0.0, %v1198
        %v1200 = vpop.f32.mrf.mxu0
        %v1201 = vadd.f32 0.0, %v1200
        %1202 = vmatprep.mubr.bf16.mxu0 0
        %1203 = vmatmul.mubr.bf16.gmra.mxu0 %v617
        %v1204 = vpop.f32.mrf.mxu0
        %v1205 = vadd.f32 0.0, %v1204
        %v1206 = vpop.f32.mrf.mxu0
        %v1207 = vadd.f32 0.0, %v1206
        %v1208 = vpop.f32.mrf.mxu0
        %v1209 = vadd.f32 0.0, %v1208
        %v1210 = vpop.f32.mrf.mxu0
        %v1211 = vadd.f32 0.0, %v1210
        %1212 = vmatprep.mubr.bf16.mxu0 0
        %1213 = vmatmul.mubr.bf16.gmra.mxu0 %v620
        %v1214 = vpop.f32.mrf.mxu0
        %v1215 = vadd.f32 0.0, %v1214
        %v1216 = vpop.f32.mrf.mxu0
        %v1217 = vadd.f32 0.0, %v1216
        %v1218 = vpop.f32.mrf.mxu0
        %v1219 = vadd.f32 0.0, %v1218
        %v1220 = vpop.f32.mrf.mxu0
        %v1221 = vadd.f32 0.0, %v1220
        %1222 = vmatprep.mubr.bf16.mxu0 0
        %1223 = vmatmul.mubr.bf16.gmra.mxu0 %v623
        %v1224 = vpop.f32.mrf.mxu0
        %v1225 = vadd.f32 0.0, %v1224
        %v1226 = vpop.f32.mrf.mxu0
        %v1227 = vadd.f32 0.0, %v1226
        %v1228 = vpop.f32.mrf.mxu0
        %v1229 = vadd.f32 0.0, %v1228
        %v1230 = vpop.f32.mrf.mxu0
        %v1231 = vadd.f32 0.0, %v1230
        %1232 = vmatprep.mubr.bf16.mxu0 0
        %1233 = vmatmul.mubr.bf16.gmra.mxu0 %v626
        %v1234 = vpop.f32.mrf.mxu0
        %v1235 = vadd.f32 0.0, %v1234
        %v1236 = vpop.f32.mrf.mxu0
        %v1237 = vadd.f32 0.0, %v1236
        %v1238 = vpop.f32.mrf.mxu0
        %v1239 = vadd.f32 0.0, %v1238
        %v1240 = vpop.f32.mrf.mxu0
        %v1241 = vadd.f32 0.0, %v1240
        %1242 = vmatprep.mubr.bf16.mxu0 0
        %1243 = vmatmul.mubr.bf16.gmra.mxu0 %v629
        %v1244 = vpop.f32.mrf.mxu0
        %v1245 = vadd.f32 0.0, %v1244
        %v1246 = vpop.f32.mrf.mxu0
        %v1247 = vadd.f32 0.0, %v1246
        %v1248 = vpop.f32.mrf.mxu0
        %v1249 = vadd.f32 0.0, %v1248
        %v1250 = vpop.f32.mrf.mxu0
        %v1251 = vadd.f32 0.0, %v1250
        %1252 = vmatprep.mubr.bf16.mxu0 0
        %1253 = vmatmul.mubr.bf16.gmra.mxu0 %v632
        %v1254 = vpop.f32.mrf.mxu0
        %v1255 = vadd.f32 0.0, %v1254
        %v1256 = vpop.f32.mrf.mxu0
        %v1257 = vadd.f32 0.0, %v1256
        %v1258 = vpop.f32.mrf.mxu0
        %v1259 = vadd.f32 0.0, %v1258
        %v1260 = vpop.f32.mrf.mxu0
        %v1261 = vadd.f32 0.0, %v1260
        %1262 = vmatprep.mubr.bf16.mxu0 0
        %1263 = vmatmul.mubr.bf16.gmra.mxu0 %v635
        %v1264 = vpop.f32.mrf.mxu0
        %v1265 = vadd.f32 0.0, %v1264
        %v1266 = vpop.f32.mrf.mxu0
        %v1267 = vadd.f32 0.0, %v1266
        %v1268 = vpop.f32.mrf.mxu0
        %v1269 = vadd.f32 0.0, %v1268
        %v1270 = vpop.f32.mrf.mxu0
        %v1271 = vadd.f32 0.0, %v1270
        %1272 = vmatprep.mubr.bf16.mxu0 0
        %1273 = vmatmul.mubr.bf16.gmra.mxu0 %v638
        %v1274 = vpop.f32.mrf.mxu0
        %v1275 = vadd.f32 0.0, %v1274
        %v1276 = vpop.f32.mrf.mxu0
        %v1277 = vadd.f32 0.0, %v1276
        %v1278 = vpop.f32.mrf.mxu0
        %v1279 = vadd.f32 0.0, %v1278
        %v1280 = vpop.f32.mrf.mxu0
        %v1281 = vadd.f32 0.0, %v1280
        %1282 = vmatprep.mubr.bf16.mxu0 0
        %1283 = vmatmul.mubr.bf16.gmra.mxu0 %v641
        %v1284 = vpop.f32.mrf.mxu0
        %v1285 = vadd.f32 0.0, %v1284
        %v1286 = vpop.f32.mrf.mxu0
        %v1287 = vadd.f32 0.0, %v1286
        %v1288 = vpop.f32.mrf.mxu0
        %v1289 = vadd.f32 0.0, %v1288
        %v1290 = vpop.f32.mrf.mxu0
        %v1291 = vadd.f32 0.0, %v1290
        %1292 = vmatprep.mubr.bf16.mxu0 0
        %1293 = vmatmul.mubr.bf16.gmra.mxu0 %v644
        %v1294 = vpop.f32.mrf.mxu0
        %v1295 = vadd.f32 0.0, %v1294
        %v1296 = vpop.f32.mrf.mxu0
        %v1297 = vadd.f32 0.0, %v1296
        %v1298 = vpop.f32.mrf.mxu0
        %v1299 = vadd.f32 0.0, %v1298
        %v1300 = vpop.f32.mrf.mxu0
        %v1301 = vadd.f32 0.0, %v1300
        %1302 = vmatprep.mubr.bf16.mxu0 0
        %1303 = vmatmul.mubr.bf16.gmra.mxu0 %v647
        %v1304 = vpop.f32.mrf.mxu0
        %v1305 = vadd.f32 0.0, %v1304
        %v1306 = vpop.f32.mrf.mxu0
        %v1307 = vadd.f32 0.0, %v1306
        %v1308 = vpop.f32.mrf.mxu0
        %v1309 = vadd.f32 0.0, %v1308
        %v1310 = vpop.f32.mrf.mxu0
        %v1311 = vadd.f32 0.0, %v1310
        %1312 = vmatprep.mubr.bf16.mxu0 0
        %1313 = vmatmul.mubr.bf16.gmra.mxu0 %v650
        %v1314 = vpop.f32.mrf.mxu0
        %v1315 = vadd.f32 0.0, %v1314
        %v1316 = vpop.f32.mrf.mxu0
        %v1317 = vadd.f32 0.0, %v1316
        %v1318 = vpop.f32.mrf.mxu0
        %v1319 = vadd.f32 0.0, %v1318
        %v1320 = vpop.f32.mrf.mxu0
        %v1321 = vadd.f32 0.0, %v1320
        %1322 = vmatprep.mubr.bf16.mxu0 0
        %1323 = vmatmul.mubr.bf16.gmra.mxu0 %v653
        %v1324 = vpop.f32.mrf.mxu0
        %v1325 = vadd.f32 0.0, %v1324
        %v1326 = vpop.f32.mrf.mxu0
        %v1327 = vadd.f32 0.0, %v1326
        %v1328 = vpop.f32.mrf.mxu0
        %v1329 = vadd.f32 0.0, %v1328
        %v1330 = vpop.f32.mrf.mxu0
        %v1331 = vadd.f32 0.0, %v1330
        %1332 = vmatprep.mubr.bf16.mxu0 0
        %1333 = vmatmul.mubr.bf16.gmra.mxu0 %v656
        %v1334 = vpop.f32.mrf.mxu0
        %v1335 = vadd.f32 0.0, %v1334
        %v1336 = vpop.f32.mrf.mxu0
        %v1337 = vadd.f32 0.0, %v1336
        %v1338 = vpop.f32.mrf.mxu0
        %v1339 = vadd.f32 0.0, %v1338
        %v1340 = vpop.f32.mrf.mxu0
        %v1341 = vadd.f32 0.0, %v1340
        %1342 = vmatprep.mubr.bf16.mxu0 0
        %1343 = vmatmul.mubr.bf16.gmra.mxu0 %v659
        %v1344 = vpop.f32.mrf.mxu0
        %v1345 = vadd.f32 0.0, %v1344
        %v1346 = vpop.f32.mrf.mxu0
        %v1347 = vadd.f32 0.0, %v1346
        %v1348 = vpop.f32.mrf.mxu0
        %v1349 = vadd.f32 0.0, %v1348
        %v1350 = vpop.f32.mrf.mxu0
        %v1351 = vadd.f32 0.0, %v1350
        %1352 = vmatprep.mubr.bf16.mxu0 0
        %1353 = vmatmul.mubr.bf16.gmra.mxu0 %v662
        %v1354 = vpop.f32.mrf.mxu0
        %v1355 = vadd.f32 0.0, %v1354
        %v1356 = vpop.f32.mrf.mxu0
        %v1357 = vadd.f32 0.0, %v1356
        %v1358 = vpop.f32.mrf.mxu0
        %v1359 = vadd.f32 0.0, %v1358
        %v1360 = vpop.f32.mrf.mxu0
        %v1361 = vadd.f32 0.0, %v1360
        %1362 = vmatprep.mubr.bf16.mxu0 0
        %1363 = vmatmul.mubr.bf16.gmra.mxu0 %v665
        %v1364 = vpop.f32.mrf.mxu0
        %v1365 = vadd.f32 0.0, %v1364
        %v1366 = vpop.f32.mrf.mxu0
        %v1367 = vadd.f32 0.0, %v1366
        %v1368 = vpop.f32.mrf.mxu0
        %v1369 = vadd.f32 0.0, %v1368
        %v1370 = vpop.f32.mrf.mxu0
        %v1371 = vadd.f32 0.0, %v1370
        %1372 = vdwg.mxu0
        %v1373 = vld [vmem:[#allocation2] sm:$0xf]
        %v1374 = vmax.f32 %v702, %v706
        %v1375 = vmax.f32 %v1374, %v712
        %v1376 = vmax.f32 %v1375, %v716
        %v1377 = vmax.f32 %v1376, %v722
        %v1378 = vmax.f32 %v1377, %v726
        %v1379 = vmax.f32 %v1378, %v732
        %v1380 = vmax.f32 %v1379, %v736
        %v1381 = vmax.f32 %v1380, %v742
        %v1382 = vmax.f32 %v1381, %v746
        %v1383 = vmax.f32 %v1382, %v752
        %v1384 = vmax.f32 %v1383, %v756
        %v1385 = vmax.f32 %v1384, %v762
        %v1386 = vmax.f32 %v1385, %v766
        %v1387 = vmax.f32 %v1386, %v772
        %v1388 = vmax.f32 %v1387, %v776
        %v1389 = vmax.f32 %v1388, %v782
        %v1390 = vmax.f32 %v1389, %v786
        %v1391 = vmax.f32 %v1390, %v792
        %v1392 = vmax.f32 %v1391, %v796
        %v1393 = vmax.f32 %v1392, %v802
        %v1394 = vmax.f32 %v1393, %v806
        %v1395 = vmax.f32 %v1394, %v812
        %v1396 = vmax.f32 %v1395, %v816
        %v1397 = vmax.f32 %v1396, %v822
        %v1398 = vmax.f32 %v1397, %v826
        %v1399 = vmax.f32 %v1398, %v832
        %v1400 = vmax.f32 %v1399, %v836
        %v1401 = vmax.f32 %v1400, %v842
        %v1402 = vmax.f32 %v1401, %v846
        %v1403 = vmax.f32 %v1402, %v852
        %v1404 = vmax.f32 %v1403, %v856
        %v1405 = vmax.f32 %v1404, %v862
        %v1406 = vmax.f32 %v1405, %v866
        %v1407 = vmax.f32 %v1406, %v872
        %v1408 = vmax.f32 %v1407, %v876
        %v1409 = vmax.f32 %v1408, %v882
        %v1410 = vmax.f32 %v1409, %v886
        %v1411 = vmax.f32 %v1410, %v892
        %v1412 = vmax.f32 %v1411, %v896
        %v1413 = vmax.f32 %v1412, %v902
        %v1414 = vmax.f32 %v1413, %v906
        %v1415 = vmax.f32 %v1414, %v912
        %v1416 = vmax.f32 %v1415, %v916
        %v1417 = vmax.f32 %v1416, %v922
        %v1418 = vmax.f32 %v1417, %v926
        %v1419 = vmax.f32 %v1418, %v932
        %v1420 = vmax.f32 %v1419, %v936
        %v1421 = vmax.f32 %v1420, %v942
        %v1422 = vmax.f32 %v1421, %v946
        %v1423 = vmax.f32 %v1422, %v952
        %v1424 = vmax.f32 %v1423, %v956
        %v1425 = vmax.f32 %v1424, %v962
        %v1426 = vmax.f32 %v1425, %v966
        %v1427 = vmax.f32 %v1426, %v972
        %v1428 = vmax.f32 %v1427, %v976
        %v1429 = vmax.f32 %v1428, %v982
        %v1430 = vmax.f32 %v1429, %v986
        %v1431 = vmax.f32 %v1430, %v992
        %v1432 = vmax.f32 %v1431, %v996
        %v1433 = vmax.f32 %v1432, %v1002
        %v1434 = vmax.f32 %v1433, %v1006
        %v1435 = vmax.f32 %v1434, %v1012
        %v1436 = vmax.f32 %v1435, %v1016
        %v1437 = vrot.slane %v1436, 4
        %v1438 = vmax.f32 %v1436, %v1437
        %v1439 = vrot.slane %v1438, 2
        %v1440 = vmax.f32 %v1438, %v1439
        %v1441 = vrot.slane %v1440, 1
        %v1442 = vmax.f32 %v1440, %v1441
        %v1443 = vmax.f32 %v704, %v708
        %v1444 = vmax.f32 %v1443, %v714
        %v1445 = vmax.f32 %v1444, %v718
        %v1446 = vmax.f32 %v1445, %v724
        %v1447 = vmax.f32 %v1446, %v728
        %v1448 = vmax.f32 %v1447, %v734
        %v1449 = vmax.f32 %v1448, %v738
        %v1450 = vmax.f32 %v1449, %v744
        %v1451 = vmax.f32 %v1450, %v748
        %v1452 = vmax.f32 %v1451, %v754
        %v1453 = vmax.f32 %v1452, %v758
        %v1454 = vmax.f32 %v1453, %v764
        %v1455 = vmax.f32 %v1454, %v768
        %v1456 = vmax.f32 %v1455, %v774
        %v1457 = vmax.f32 %v1456, %v778
        %v1458 = vmax.f32 %v1457, %v784
        %v1459 = vmax.f32 %v1458, %v788
        %v1460 = vmax.f32 %v1459, %v794
        %v1461 = vmax.f32 %v1460, %v798
        %v1462 = vmax.f32 %v1461, %v804
        %v1463 = vmax.f32 %v1462, %v808
        %v1464 = vmax.f32 %v1463, %v814
        %v1465 = vmax.f32 %v1464, %v818
        %v1466 = vmax.f32 %v1465, %v824
        %v1467 = vmax.f32 %v1466, %v828
        %v1468 = vmax.f32 %v1467, %v834
        %v1469 = vmax.f32 %v1468, %v838
        %v1470 = vmax.f32 %v1469, %v844
        %v1471 = vmax.f32 %v1470, %v848
        %v1472 = vmax.f32 %v1471, %v854
        %v1473 = vmax.f32 %v1472, %v858
        %v1474 = vmax.f32 %v1473, %v864
        %v1475 = vmax.f32 %v1474, %v868
        %v1476 = vmax.f32 %v1475, %v874
        %v1477 = vmax.f32 %v1476, %v878
        %v1478 = vmax.f32 %v1477, %v884
        %v1479 = vmax.f32 %v1478, %v888
        %v1480 = vmax.f32 %v1479, %v894
        %v1481 = vmax.f32 %v1480, %v898
        %v1482 = vmax.f32 %v1481, %v904
        %v1483 = vmax.f32 %v1482, %v908
        %v1484 = vmax.f32 %v1483, %v914
        %v1485 = vmax.f32 %v1484, %v918
        %v1486 = vmax.f32 %v1485, %v924
        %v1487 = vmax.f32 %v1486, %v928
        %v1488 = vmax.f32 %v1487, %v934
        %v1489 = vmax.f32 %v1488, %v938
        %v1490 = vmax.f32 %v1489, %v944
        %v1491 = vmax.f32 %v1490, %v948
        %v1492 = vmax.f32 %v1491, %v954
        %v1493 = vmax.f32 %v1492, %v958
        %v1494 = vmax.f32 %v1493, %v964
        %v1495 = vmax.f32 %v1494, %v968
        %v1496 = vmax.f32 %v1495, %v974
        %v1497 = vmax.f32 %v1496, %v978
        %v1498 = vmax.f32 %v1497, %v984
        %v1499 = vmax.f32 %v1498, %v988
        %v1500 = vmax.f32 %v1499, %v994
        %v1501 = vmax.f32 %v1500, %v998
        %v1502 = vmax.f32 %v1501, %v1004
        %v1503 = vmax.f32 %v1502, %v1008
        %v1504 = vmax.f32 %v1503, %v1014
        %v1505 = vmax.f32 %v1504, %v1018
        %v1506 = vrot.slane %v1505, 4
        %v1507 = vmax.f32 %v1505, %v1506
        %v1508 = vrot.slane %v1507, 2
        %v1509 = vmax.f32 %v1507, %v1508
        %v1510 = vrot.slane %v1509, 1
        %v1511 = vmax.f32 %v1509, %v1510
        %v1512 = vmax.f32 %v1055, %v1059
        %v1513 = vmax.f32 %v1512, %v1065
        %v1514 = vmax.f32 %v1513, %v1069
        %v1515 = vmax.f32 %v1514, %v1075
        %v1516 = vmax.f32 %v1515, %v1079
        %v1517 = vmax.f32 %v1516, %v1085
        %v1518 = vmax.f32 %v1517, %v1089
        %v1519 = vmax.f32 %v1518, %v1095
        %v1520 = vmax.f32 %v1519, %v1099
        %v1521 = vmax.f32 %v1520, %v1105
        %v1522 = vmax.f32 %v1521, %v1109
        %v1523 = vmax.f32 %v1522, %v1115
        %v1524 = vmax.f32 %v1523, %v1119
        %v1525 = vmax.f32 %v1524, %v1125
        %v1526 = vmax.f32 %v1525, %v1129
        %v1527 = vmax.f32 %v1526, %v1135
        %v1528 = vmax.f32 %v1527, %v1139
        %v1529 = vmax.f32 %v1528, %v1145
        %v1530 = vmax.f32 %v1529, %v1149
        %v1531 = vmax.f32 %v1530, %v1155
        %v1532 = vmax.f32 %v1531, %v1159
        %v1533 = vmax.f32 %v1532, %v1165
        %v1534 = vmax.f32 %v1533, %v1169
        %v1535 = vmax.f32 %v1534, %v1175
        %v1536 = vmax.f32 %v1535, %v1179
        %v1537 = vmax.f32 %v1536, %v1185
        %v1538 = vmax.f32 %v1537, %v1189
        %v1539 = vmax.f32 %v1538, %v1195
        %v1540 = vmax.f32 %v1539, %v1199
        %v1541 = vmax.f32 %v1540, %v1205
        %v1542 = vmax.f32 %v1541, %v1209
        %v1543 = vmax.f32 %v1542, %v1215
        %v1544 = vmax.f32 %v1543, %v1219
        %v1545 = vmax.f32 %v1544, %v1225
        %v1546 = vmax.f32 %v1545, %v1229
        %v1547 = vmax.f32 %v1546, %v1235
        %v1548 = vmax.f32 %v1547, %v1239
        %v1549 = vmax.f32 %v1548, %v1245
        %v1550 = vmax.f32 %v1549, %v1249
        %v1551 = vmax.f32 %v1550, %v1255
        %v1552 = vmax.f32 %v1551, %v1259
        %v1553 = vmax.f32 %v1552, %v1265
        %v1554 = vmax.f32 %v1553, %v1269
        %v1555 = vmax.f32 %v1554, %v1275
        %v1556 = vmax.f32 %v1555, %v1279
        %v1557 = vmax.f32 %v1556, %v1285
        %v1558 = vmax.f32 %v1557, %v1289
        %v1559 = vmax.f32 %v1558, %v1295
        %v1560 = vmax.f32 %v1559, %v1299
        %v1561 = vmax.f32 %v1560, %v1305
        %v1562 = vmax.f32 %v1561, %v1309
        %v1563 = vmax.f32 %v1562, %v1315
        %v1564 = vmax.f32 %v1563, %v1319
        %v1565 = vmax.f32 %v1564, %v1325
        %v1566 = vmax.f32 %v1565, %v1329
        %v1567 = vmax.f32 %v1566, %v1335
        %v1568 = vmax.f32 %v1567, %v1339
        %v1569 = vmax.f32 %v1568, %v1345
        %v1570 = vmax.f32 %v1569, %v1349
        %v1571 = vmax.f32 %v1570, %v1355
        %v1572 = vmax.f32 %v1571, %v1359
        %v1573 = vmax.f32 %v1572, %v1365
        %v1574 = vmax.f32 %v1573, %v1369
        %v1575 = vrot.slane %v1574, 4
        %v1576 = vmax.f32 %v1574, %v1575
        %v1577 = vrot.slane %v1576, 2
        %v1578 = vmax.f32 %v1576, %v1577
        %v1579 = vrot.slane %v1578, 1
        %v1580 = vmax.f32 %v1578, %v1579
        %v1581 = vmax.f32 %v1057, %v1061
        %v1582 = vmax.f32 %v1581, %v1067
        %v1583 = vmax.f32 %v1582, %v1071
        %v1584 = vmax.f32 %v1583, %v1077
        %v1585 = vmax.f32 %v1584, %v1081
        %v1586 = vmax.f32 %v1585, %v1087
        %v1587 = vmax.f32 %v1586, %v1091
        %v1588 = vmax.f32 %v1587, %v1097
        %v1589 = vmax.f32 %v1588, %v1101
        %v1590 = vmax.f32 %v1589, %v1107
        %v1591 = vmax.f32 %v1590, %v1111
        %v1592 = vmax.f32 %v1591, %v1117
        %v1593 = vmax.f32 %v1592, %v1121
        %v1594 = vmax.f32 %v1593, %v1127
        %v1595 = vmax.f32 %v1594, %v1131
        %v1596 = vmax.f32 %v1595, %v1137
        %v1597 = vmax.f32 %v1596, %v1141
        %v1598 = vmax.f32 %v1597, %v1147
        %v1599 = vmax.f32 %v1598, %v1151
        %v1600 = vmax.f32 %v1599, %v1157
        %v1601 = vmax.f32 %v1600, %v1161
        %v1602 = vmax.f32 %v1601, %v1167
        %v1603 = vmax.f32 %v1602, %v1171
        %v1604 = vmax.f32 %v1603, %v1177
        %v1605 = vmax.f32 %v1604, %v1181
        %v1606 = vmax.f32 %v1605, %v1187
        %v1607 = vmax.f32 %v1606, %v1191
        %v1608 = vmax.f32 %v1607, %v1197
        %v1609 = vmax.f32 %v1608, %v1201
        %v1610 = vmax.f32 %v1609, %v1207
        %v1611 = vmax.f32 %v1610, %v1211
        %v1612 = vmax.f32 %v1611, %v1217
        %v1613 = vmax.f32 %v1612, %v1221
        %v1614 = vmax.f32 %v1613, %v1227
        %v1615 = vmax.f32 %v1614, %v1231
        %v1616 = vmax.f32 %v1615, %v1237
        %v1617 = vmax.f32 %v1616, %v1241
        %v1618 = vmax.f32 %v1617, %v1247
        %v1619 = vmax.f32 %v1618, %v1251
        %v1620 = vmax.f32 %v1619, %v1257
        %v1621 = vmax.f32 %v1620, %v1261
        %v1622 = vmax.f32 %v1621, %v1267
        %v1623 = vmax.f32 %v1622, %v1271
        %v1624 = vmax.f32 %v1623, %v1277
        %v1625 = vmax.f32 %v1624, %v1281
        %v1626 = vmax.f32 %v1625, %v1287
        %v1627 = vmax.f32 %v1626, %v1291
        %v1628 = vmax.f32 %v1627, %v1297
        %v1629 = vmax.f32 %v1628, %v1301
        %v1630 = vmax.f32 %v1629, %v1307
        %v1631 = vmax.f32 %v1630, %v1311
        %v1632 = vmax.f32 %v1631, %v1317
        %v1633 = vmax.f32 %v1632, %v1321
        %v1634 = vmax.f32 %v1633, %v1327
        %v1635 = vmax.f32 %v1634, %v1331
        %v1636 = vmax.f32 %v1635, %v1337
        %v1637 = vmax.f32 %v1636, %v1341
        %v1638 = vmax.f32 %v1637, %v1347
        %v1639 = vmax.f32 %v1638, %v1351
        %v1640 = vmax.f32 %v1639, %v1357
        %v1641 = vmax.f32 %v1640, %v1361
        %v1642 = vmax.f32 %v1641, %v1367
        %v1643 = vmax.f32 %v1642, %v1371
        %v1644 = vrot.slane %v1643, 4
        %v1645 = vmax.f32 %v1643, %v1644
        %v1646 = vrot.slane %v1645, 2
        %v1647 = vmax.f32 %v1645, %v1646
        %v1648 = vrot.slane %v1647, 1
        %v1649 = vmax.f32 %v1647, %v1648
        %v1654 = vcombine.low %v1442, %v1511
        %v1655 = vcombine.low %v1580, %v1649
        %v1657 = vunpack.c.l.s4 1966171168
        %v1658 = vunpack.c.0.s8 %v1657
        %v1659 = vlaneseq
        %v1660 = vshrl.u32 %v1659, 7
        %v1661 = vsub.s32 %v1658, %v1660
        %v1662 = vrot.slane %v1654, %v1661
        %v1664 = vunpack.c.l.s4 1966171168
        %v1665 = vunpack.c.0.s8 %v1664
        %v1666 = vlaneseq
        %v1667 = vshrl.u32 %v1666, 7
        %v1668 = vsub.s32 %v1665, %v1667
        %v1669 = vrot.slane %v1655, %v1668
        %v1670 = vcombine.low %v1662, %v1669
        %v1672 = vunpack.c.l.s4 1966171168
        %v1673 = vunpack.c.0.s8 %v1672
        %v1674 = vlaneseq
        %v1675 = vshrl.u32 %v1674, 7
        %v1676 = vsub.s32 %v1673, %v1675
        %v1677 = vrot.slane %v1670, %v1676
        %v1679 = vmax.f32 %v1373, %v1677
        %v1680 = vlaneseq
        %vm1681 = vcmp.ge.s32.totalorder %v1680, 0
        %vm1682 = vcmp.lt.s32.totalorder %v1680, 512
        %vm1683 = vmand %vm1681, %vm1682
        %1684 = vst.msk [vmem:[#allocation2] sm:$0xf] %vm1683, %v1679
        // Predicated region
        $region53: #{tpu_custom_call.1} parent=47 // pred_check
          %p1685 = pneg %p305
        $region54: #{tpu_custom_call.1} parent=47 // pred_check_branch
          %1687 = sbr.rel (%p1685) target = $region56
        $region55: #{tpu_custom_call.1} parent=47 // pred_region
          %v1688 = vld [vmem:[#allocation2] sm:$0xf]
          %v1689 = vld [vmem:[%s2] sm:$0xf]
          %v1690 = vadd.f32 %v1688, %v1689
          %vm1691 = vcmp.ge.f32.partialorder %v1690, 0.0
          %v1692 = vmul.f32 %v1690, 0.2
          %v1693 = vsel %vm1691, %v1690, %v1692
          %v1694 = vld [vmem:[%s3] sm:$0xff]
          %v1695 = vld [vmem:[%s3 + $0x8] sm:$0xff]
          %v1696 = vld [vmem:[%s3 + $0x10] sm:$0xff]
          %v1697 = vld [vmem:[%s3 + $0x18] sm:$0xff]
          %v1698 = vld [vmem:[%s3 + $0x20] sm:$0xff]
          %v1699 = vld [vmem:[%s3 + $0x28] sm:$0xff]
          %v1700 = vld [vmem:[%s3 + $0x30] sm:$0xff]
          %v1701 = vld [vmem:[%s3 + $0x38] sm:$0xff]
          %v1702 = vld [vmem:[%s3 + $0x40] sm:$0xff]
          %v1703 = vld [vmem:[%s3 + $0x48] sm:$0xff]
          %v1704 = vld [vmem:[%s3 + $0x50] sm:$0xff]
          %v1705 = vld [vmem:[%s3 + $0x58] sm:$0xff]
          %v1706 = vld [vmem:[%s3 + $0x60] sm:$0xff]
          %v1707 = vld [vmem:[%s3 + $0x68] sm:$0xff]
          %v1708 = vld [vmem:[%s3 + $0x70] sm:$0xff]
          %v1709 = vld [vmem:[%s3 + $0x78] sm:$0xff]
          %v1710 = vld [vmem:[%s3 + $0x80] sm:$0xff]
          %v1711 = vld [vmem:[%s3 + $0x88] sm:$0xff]
          %v1712 = vld [vmem:[%s3 + $0x90] sm:$0xff]
          %v1713 = vld [vmem:[%s3 + $0x98] sm:$0xff]
          %v1714 = vld [vmem:[%s3 + $0xa0] sm:$0xff]
          %v1715 = vld [vmem:[%s3 + $0xa8] sm:$0xff]
          %v1716 = vld [vmem:[%s3 + $0xb0] sm:$0xff]
          %v1717 = vld [vmem:[%s3 + $0xb8] sm:$0xff]
          %v1718 = vld [vmem:[%s3 + $0xc0] sm:$0xff]
          %v1719 = vld [vmem:[%s3 + $0xc8] sm:$0xff]
          %v1720 = vld [vmem:[%s3 + $0xd0] sm:$0xff]
          %v1721 = vld [vmem:[%s3 + $0xd8] sm:$0xff]
          %v1722 = vld [vmem:[%s3 + $0xe0] sm:$0xff]
          %v1723 = vld [vmem:[%s3 + $0xe8] sm:$0xff]
          %v1724 = vld [vmem:[%s3 + $0xf0] sm:$0xff]
          %v1725 = vld [vmem:[%s3 + $0xf8] sm:$0xff]
          %v1726 = vld [vmem:[%s3 + $0x100] sm:$0xff]
          %v1727 = vld [vmem:[%s3 + $0x108] sm:$0xff]
          %v1728 = vld [vmem:[%s3 + $0x110] sm:$0xff]
          %v1729 = vld [vmem:[%s3 + $0x118] sm:$0xff]
          %v1730 = vld [vmem:[%s3 + $0x120] sm:$0xff]
          %v1731 = vld [vmem:[%s3 + $0x128] sm:$0xff]
          %v1732 = vld [vmem:[%s3 + $0x130] sm:$0xff]
          %v1733 = vld [vmem:[%s3 + $0x138] sm:$0xff]
          %v1734 = vld [vmem:[%s3 + $0x140] sm:$0xff]
          %v1735 = vld [vmem:[%s3 + $0x148] sm:$0xff]
          %v1736 = vld [vmem:[%s3 + $0x150] sm:$0xff]
          %v1737 = vld [vmem:[%s3 + $0x158] sm:$0xff]
          %v1738 = vld [vmem:[%s3 + $0x160] sm:$0xff]
          %v1739 = vld [vmem:[%s3 + $0x168] sm:$0xff]
          %v1740 = vld [vmem:[%s3 + $0x170] sm:$0xff]
          %v1741 = vld [vmem:[%s3 + $0x178] sm:$0xff]
          %v1742 = vld [vmem:[%s3 + $0x180] sm:$0xff]
          %v1743 = vld [vmem:[%s3 + $0x188] sm:$0xff]
          %v1744 = vld [vmem:[%s3 + $0x190] sm:$0xff]
          %v1745 = vld [vmem:[%s3 + $0x198] sm:$0xff]
          %v1746 = vld [vmem:[%s3 + $0x1a0] sm:$0xff]
          %v1747 = vld [vmem:[%s3 + $0x1a8] sm:$0xff]
          %v1748 = vld [vmem:[%s3 + $0x1b0] sm:$0xff]
          %v1749 = vld [vmem:[%s3 + $0x1b8] sm:$0xff]
          %v1750 = vld [vmem:[%s3 + $0x1c0] sm:$0xff]
          %v1751 = vld [vmem:[%s3 + $0x1c8] sm:$0xff]
          %v1752 = vld [vmem:[%s3 + $0x1d0] sm:$0xff]
          %v1753 = vld [vmem:[%s3 + $0x1d8] sm:$0xff]
          %v1754 = vld [vmem:[%s3 + $0x1e0] sm:$0xff]
          %v1755 = vld [vmem:[%s3 + $0x1e8] sm:$0xff]
          %v1756 = vld [vmem:[%s3 + $0x1f0] sm:$0xff]
          %v1757 = vld [vmem:[%s3 + $0x1f8] sm:$0xff]
          %v1758 = vld [vmem:[%s4] sm:$0x1]
          %v1760 = vlaneseq
          %v1761 = vshrl.u32 %v1760, 7
          %v1762 = vsub.s32 0, %v1761
          %v1763 = vrot.slane %v1693, %v1762
          %v1764 = vlaneseq
          %v1765 = vshrl.u32 %v1764, 7
          %v1766 = vsub.s32 1, %v1765
          %v1767 = vrot.slane %v1693, %v1766
          %v1768 = vlaneseq
          %v1769 = vshrl.u32 %v1768, 7
          %v1770 = vsub.s32 2, %v1769
          %v1771 = vrot.slane %v1693, %v1770
          %v1772 = vlaneseq
          %v1773 = vshrl.u32 %v1772, 7
          %v1774 = vsub.s32 3, %v1773
          %v1775 = vrot.slane %v1693, %v1774
          %1780 = vmatprep.subr.mxu0 0.0
          %1781 = vmatpush1.msra.mxu0 %v1709
          %1782 = vmatprep.subr.mxu0 0.0
          %1783 = vmatpush1.msra.mxu0 %v1708
          %1784 = vmatprep.subr.mxu0 0.0
          %1785 = vmatpush1.msra.mxu0 %v1707
          %1786 = vmatprep.subr.mxu0 0.0
          %1787 = vmatpush1.msra.mxu0 %v1706
          %1788 = vmatprep.subr.mxu0 0.0
          %1789 = vmatpush1.msra.mxu0 %v1705
          %1790 = vmatprep.subr.mxu0 0.0
          %1791 = vmatpush1.msra.mxu0 %v1704
          %1792 = vmatprep.subr.mxu0 0.0
          %1793 = vmatpush1.msra.mxu0 %v1703
          %1794 = vmatprep.subr.mxu0 0.0
          %1795 = vmatpush1.msra.mxu0 %v1702
          %1796 = vmatprep.subr.mxu0 0.0
          %1797 = vmatpush1.msra.mxu0 %v1701
          %1798 = vmatprep.subr.mxu0 0.0
          %1799 = vmatpush1.msra.mxu0 %v1700
          %1800 = vmatprep.subr.mxu0 0.0
          %1801 = vmatpush1.msra.mxu0 %v1699
          %1802 = vmatprep.subr.mxu0 0.0
          %1803 = vmatpush1.msra.mxu0 %v1698
          %1804 = vmatprep.subr.mxu0 0.0
          %1805 = vmatpush1.msra.mxu0 %v1697
          %1806 = vmatprep.subr.mxu0 0.0
          %1807 = vmatpush1.msra.mxu0 %v1696
          %1808 = vmatprep.subr.mxu0 0.0
          %1809 = vmatpush1.msra.mxu0 %v1695
          %1810 = vmatprep.subr.mxu0 0.0
          %1811 = vmatpush1.msra.mxu0 %v1694
          %1812 = vmatprep.subr.mxu0 0.0
          %1813 = vmatpush2.msra.mxu0 %v1725
          %1814 = vmatprep.subr.mxu0 0.0
          %1815 = vmatpush2.msra.mxu0 %v1724
          %1816 = vmatprep.subr.mxu0 0.0
          %1817 = vmatpush2.msra.mxu0 %v1723
          %1818 = vmatprep.subr.mxu0 0.0
          %1819 = vmatpush2.msra.mxu0 %v1722
          %1820 = vmatprep.subr.mxu0 0.0
          %1821 = vmatpush2.msra.mxu0 %v1721
          %1822 = vmatprep.subr.mxu0 0.0
          %1823 = vmatpush2.msra.mxu0 %v1720
          %1824 = vmatprep.subr.mxu0 0.0
          %1825 = vmatpush2.msra.mxu0 %v1719
          %1826 = vmatprep.subr.mxu0 0.0
          %1827 = vmatpush2.msra.mxu0 %v1718
          %1828 = vmatprep.subr.mxu0 0.0
          %1829 = vmatpush2.msra.mxu0 %v1717
          %1830 = vmatprep.subr.mxu0 0.0
          %1831 = vmatpush2.msra.mxu0 %v1716
          %1832 = vmatprep.subr.mxu0 0.0
          %1833 = vmatpush2.msra.mxu0 %v1715
          %1834 = vmatprep.subr.mxu0 0.0
          %1835 = vmatpush2.msra.mxu0 %v1714
          %1836 = vmatprep.subr.mxu0 0.0
          %1837 = vmatpush2.msra.mxu0 %v1713
          %1838 = vmatprep.subr.mxu0 0.0
          %1839 = vmatpush2.msra.mxu0 %v1712
          %1840 = vmatprep.subr.mxu0 0.0
          %1841 = vmatpush2.msra.mxu0 %v1711
          %1842 = vmatprep.subr.mxu0 0.0
          %1843 = vmatpush2.msra.mxu0 %v1710
          %1844 = vmatprep.mubr.f32.mxu0 %v1767
          %1845 = vmatmul.mubr.f32.gmra.mxu0 %v1763
          %v1846 = vpop.f32.mrf.mxu0
          %v1847 = vadd.f32 %v1758, %v1846
          %v1848 = vpop.f32.mrf.mxu0
          %1849 = vdwg.mxu0
          %1850 = vmatprep.subr.mxu0 0.0
          %1851 = vmatpush1.msra.mxu0 %v1741
          %1852 = vmatprep.subr.mxu0 0.0
          %1853 = vmatpush1.msra.mxu0 %v1740
          %1854 = vmatprep.subr.mxu0 0.0
          %1855 = vmatpush1.msra.mxu0 %v1739
          %1856 = vmatprep.subr.mxu0 0.0
          %1857 = vmatpush1.msra.mxu0 %v1738
          %1858 = vmatprep.subr.mxu0 0.0
          %1859 = vmatpush1.msra.mxu0 %v1737
          %1860 = vmatprep.subr.mxu0 0.0
          %1861 = vmatpush1.msra.mxu0 %v1736
          %1862 = vmatprep.subr.mxu0 0.0
          %1863 = vmatpush1.msra.mxu0 %v1735
          %1864 = vmatprep.subr.mxu0 0.0
          %1865 = vmatpush1.msra.mxu0 %v1734
          %1866 = vmatprep.subr.mxu0 0.0
          %1867 = vmatpush1.msra.mxu0 %v1733
          %1868 = vmatprep.subr.mxu0 0.0
          %1869 = vmatpush1.msra.mxu0 %v1732
          %1870 = vmatprep.subr.mxu0 0.0
          %1871 = vmatpush1.msra.mxu0 %v1731
          %1872 = vmatprep.subr.mxu0 0.0
          %1873 = vmatpush1.msra.mxu0 %v1730
          %1874 = vmatprep.subr.mxu0 0.0
          %1875 = vmatpush1.msra.mxu0 %v1729
          %1876 = vmatprep.subr.mxu0 0.0
          %1877 = vmatpush1.msra.mxu0 %v1728
          %1878 = vmatprep.subr.mxu0 0.0
          %1879 = vmatpush1.msra.mxu0 %v1727
          %1880 = vmatprep.subr.mxu0 0.0
          %1881 = vmatpush1.msra.mxu0 %v1726
          %1882 = vmatprep.subr.mxu0 0.0
          %1883 = vmatpush2.msra.mxu0 %v1757
          %1884 = vmatprep.subr.mxu0 0.0
          %1885 = vmatpush2.msra.mxu0 %v1756
          %1886 = vmatprep.subr.mxu0 0.0
          %1887 = vmatpush2.msra.mxu0 %v1755
          %1888 = vmatprep.subr.mxu0 0.0
          %1889 = vmatpush2.msra.mxu0 %v1754
          %1890 = vmatprep.subr.mxu0 0.0
          %1891 = vmatpush2.msra.mxu0 %v1753
          %1892 = vmatprep.subr.mxu0 0.0
          %1893 = vmatpush2.msra.mxu0 %v1752
          %1894 = vmatprep.subr.mxu0 0.0
          %1895 = vmatpush2.msra.mxu0 %v1751
          %1896 = vmatprep.subr.mxu0 0.0
          %1897 = vmatpush2.msra.mxu0 %v1750
          %1898 = vmatprep.subr.mxu0 0.0
          %1899 = vmatpush2.msra.mxu0 %v1749
          %1900 = vmatprep.subr.mxu0 0.0
          %1901 = vmatpush2.msra.mxu0 %v1748
          %1902 = vmatprep.subr.mxu0 0.0
          %1903 = vmatpush2.msra.mxu0 %v1747
          %1904 = vmatprep.subr.mxu0 0.0
          %1905 = vmatpush2.msra.mxu0 %v1746
          %1906 = vmatprep.subr.mxu0 0.0
          %1907 = vmatpush2.msra.mxu0 %v1745
          %1908 = vmatprep.subr.mxu0 0.0
          %1909 = vmatpush2.msra.mxu0 %v1744
          %1910 = vmatprep.subr.mxu0 0.0
          %1911 = vmatpush2.msra.mxu0 %v1743
          %1912 = vmatprep.subr.mxu0 0.0
          %1913 = vmatpush2.msra.mxu0 %v1742
          %1914 = vmatprep.mubr.f32.mxu0 %v1775
          %1915 = vmatmul.mubr.f32.gmra.mxu0 %v1771
          %v1916 = vpop.f32.mrf.mxu0
          %v1917 = vadd.f32 %v1847, %v1916
          %v1918 = vpop.f32.mrf.mxu0
          %1919 = vdwg.mxu0
          %vm1920 = vcmp.ge.f32.partialorder %v1917, 0.0
          %v1921 = vmul.f32 %v1917, 0.2
          %v1922 = vsel %vm1920, %v1917, %v1921
          %v1923 = vld [vmem:[%s5] sm:$0xff]
          %v1924 = vld [vmem:[%s5 + $0x8] sm:$0xff]
          %v1925 = vld [vmem:[%s5 + $0x10] sm:$0xff]
          %v1926 = vld [vmem:[%s5 + $0x18] sm:$0xff]
          %v1927 = vld [vmem:[%s5 + $0x20] sm:$0xff]
          %v1928 = vld [vmem:[%s5 + $0x28] sm:$0xff]
          %v1929 = vld [vmem:[%s5 + $0x30] sm:$0xff]
          %v1930 = vld [vmem:[%s5 + $0x38] sm:$0xff]
          %v1931 = vld [vmem:[%s6] sm:$0x1]
          %v1933 = vsel %vm570, %v1922, 0
          %1935 = vmatprep.subr.mxu0 0.0
          %1936 = vmatpush1.msra.mxu0 0.0
          %1937 = vmatprep.subr.mxu0 0.0
          %1938 = vmatpush1.msra.mxu0 0.0
          %1939 = vmatprep.subr.mxu0 0.0
          %1940 = vmatpush1.msra.mxu0 0.0
          %1941 = vmatprep.subr.mxu0 0.0
          %1942 = vmatpush1.msra.mxu0 0.0
          %1943 = vmatprep.subr.mxu0 0.0
          %1944 = vmatpush1.msra.mxu0 0.0
          %1945 = vmatprep.subr.mxu0 0.0
          %1946 = vmatpush1.msra.mxu0 0.0
          %1947 = vmatprep.subr.mxu0 0.0
          %1948 = vmatpush1.msra.mxu0 0.0
          %1949 = vmatprep.subr.mxu0 0.0
          %1950 = vmatpush1.msra.mxu0 0.0
          %1951 = vmatprep.subr.mxu0 0.0
          %1952 = vmatpush1.msra.mxu0 %v1930
          %1953 = vmatprep.subr.mxu0 0.0
          %1954 = vmatpush1.msra.mxu0 %v1929
          %1955 = vmatprep.subr.mxu0 0.0
          %1956 = vmatpush1.msra.mxu0 %v1928
          %1957 = vmatprep.subr.mxu0 0.0
          %1958 = vmatpush1.msra.mxu0 %v1927
          %1959 = vmatprep.subr.mxu0 0.0
          %1960 = vmatpush1.msra.mxu0 %v1926
          %1961 = vmatprep.subr.mxu0 0.0
          %1962 = vmatpush1.msra.mxu0 %v1925
          %1963 = vmatprep.subr.mxu0 0.0
          %1964 = vmatpush1.msra.mxu0 %v1924
          %1965 = vmatprep.subr.mxu0 0.0
          %1966 = vmatpush1.msra.mxu0 %v1923
          %1967 = vmatprep.subr.mxu0 0.0
          %1968 = vmatpush2.msra.mxu0 0.0
          %1969 = vmatprep.subr.mxu0 0.0
          %1970 = vmatpush2.msra.mxu0 0.0
          %1971 = vmatprep.subr.mxu0 0.0
          %1972 = vmatpush2.msra.mxu0 0.0
          %1973 = vmatprep.subr.mxu0 0.0
          %1974 = vmatpush2.msra.mxu0 0.0
          %1975 = vmatprep.subr.mxu0 0.0
          %1976 = vmatpush2.msra.mxu0 0.0
          %1977 = vmatprep.subr.mxu0 0.0
          %1978 = vmatpush2.msra.mxu0 0.0
          %1979 = vmatprep.subr.mxu0 0.0
          %1980 = vmatpush2.msra.mxu0 0.0
          %1981 = vmatprep.subr.mxu0 0.0
          %1982 = vmatpush2.msra.mxu0 0.0
          %1983 = vmatprep.subr.mxu0 0.0
          %1984 = vmatpush2.msra.mxu0 0.0
          %1985 = vmatprep.subr.mxu0 0.0
          %1986 = vmatpush2.msra.mxu0 0.0
          %1987 = vmatprep.subr.mxu0 0.0
          %1988 = vmatpush2.msra.mxu0 0.0
          %1989 = vmatprep.subr.mxu0 0.0
          %1990 = vmatpush2.msra.mxu0 0.0
          %1991 = vmatprep.subr.mxu0 0.0
          %1992 = vmatpush2.msra.mxu0 0.0
          %1993 = vmatprep.subr.mxu0 0.0
          %1994 = vmatpush2.msra.mxu0 0.0
          %1995 = vmatprep.subr.mxu0 0.0
          %1996 = vmatpush2.msra.mxu0 0.0
          %1997 = vmatprep.subr.mxu0 0.0
          %1998 = vmatpush2.msra.mxu0 0.0
          %1999 = vmatprep.mubr.f32.mxu0 0.0
          %2000 = vmatmul.mubr.f32.gmra.mxu0 %v1933
          %v2001 = vpop.f32.mrf.mxu0
          %v2002 = vadd.f32 %v1931, %v2001
          %v2003 = vpop.f32.mrf.mxu0
          %2004 = vdwg.mxu0
          %vm2005 = vcmask 24576
          %2006 = vst.msk [vmem:[%s293] sm:$0x1] %vm2005, %v2002
        $region56: #{tpu_custom_call.1} parent=47 // pred_fallthru
          _
        %s2007 = sand.u32 %s195, 1
        %s2008 = scalar_lea.sflag [#allocation4], %s2007
        %s2009 = sand.u32 %s195, 1
        %s2010 = scalar_lea.vmem [#allocation3], %s2009
        // Predicated region
        $region57: #{tpu_custom_call.1} parent=47 // pred_check
          %p2011 = pneg %p205
        $region58: #{tpu_custom_call.1} parent=47 // pred_check_branch
          %2013 = sbr.rel (%p2011) target = $region60
        $region59: #{tpu_custom_call.1} parent=47 // pred_region
          %s2015 = ssub.s32 16, 16
          %2016 = vsyncadd %s2008, %s2015
          %s2017 = smul.addr %s25, 16
          %s2018 = scalar_lea.hbm %s7, %s2017
          %s2020 = sshll.u32 %s2010, 4
          %s2021 = int_to_ptr.vmem [resolvable:$true] %s2020
          %2023 = dma.vmem_to_hbm [thread:$0]  %s2021, 16, %s2018, %s2008
        $region60: #{tpu_custom_call.1} parent=47 // pred_fallthru
          _
      $region48: #{tpu_custom_call.1} parent=5 // pred_fallthru
        _
      %p2024 = scmp.le.s32.totalorder 2, %s16
      // Predicated region
      $region61: #{tpu_custom_call.1} parent=5 // pred_check
        %p2025 = pneg %p2024
      $region62: #{tpu_custom_call.1} parent=5 // pred_check_branch
        %2027 = sbr.rel (%p2025) target = $region64
      $region63: #{tpu_custom_call.1} parent=5 // pred_region
        %s2028 = ssub.s32 %s16, 2
        // Predicated region
        $region65: #{tpu_custom_call.1} parent=63 // pred_check
          %p2029 = pneg %p211
        $region66: #{tpu_custom_call.1} parent=63 // pred_check_branch
          %2031 = sbr.rel (%p2029) target = $region68
        $region67: #{tpu_custom_call.1} parent=63 // pred_region
          %s2032 = sand.u32 %s196, 1
          %s2033 = scalar_lea.sflag [#allocation4], %s2032
          %s2034 = sand.u32 %s196, 1
          %s2035 = scalar_lea.vmem [#allocation3], %s2034
          %2036 = dma.done %s2033, 16
        $region68: #{tpu_custom_call.1} parent=63 // pred_fallthru
          _
      $region64: #{tpu_custom_call.1} parent=5 // pred_fallthru
        _
    $region6: #{tpu_custom_call.1} parent=1 // loop_footer
      %s20 = sadd.s32 1, %s16
    $region7: #{tpu_custom_call.1} parent=1 // loop_footer_branch
      %15 = sbr.rel target = $region3
    $region8: #{tpu_custom_call.1} parent=1 // loop_exit
      _
    %2037 = vsyncpa [#allocation4], 1
    %s2038 = scalar_lea.sflag [#allocation4], 1
    %2039 = vsyncpa %s2038, 1

</llo_original>
